<compile_context>
chip_gen: v7x
topology: tpu7x:2x2x1
jax: 0.10.0
libtpu: 0.0.40
codegen_flags: <defaults>
</compile_context>

<pallas_src>
import functools

import jax
import jax.numpy as jnp
from jax.experimental import pallas as pl
from jax.experimental.pallas import tpu as pltpu

OBS_DIM = 4                     # CartPole observation_space.shape[0]
NUM_ACTIONS = 2                 # CartPole action_space.n
HIDDEN_SIZE = 256

OBS_PAD = 8                     # obs (4) + bias lane (1) + zero pad; f32 sublane min
BIAS_LANE = OBS_DIM             # padded-state lane 4 carries a constant 1.0
COMB_HIDDEN = 2 * HIDDEN_SIZE   # fused [actor hidden | critic hidden]
OUT_PAD = 8                     # fused head lanes: 0,1 = policy logits, 2 = value
VALUE_LANE = NUM_ACTIONS        # lane 2 carries the critic value

DEFAULT_TILE_B = 128            # batch rows / grid step (v5e MXU rows; 256 also fine on v6e/v7x)


def _a2c_kernel(state_ref, w1_ref, w2t_ref, b2_ref, value_ref, policy_ref):
    x = state_ref[...]                                               # (tb, 8) f32

    # fused layer 1 (+ folded b1 via the bias lane): one MXU push for actor+critic
    h = jnp.maximum(
        jnp.dot(x, w1_ref[...], preferred_element_type=jnp.float32), 0.0)   # (tb, 512)

    # fused block-diagonal layer 2, weight stored transposed (lane-dense):
    # contract the lane axis of both operands (== trans_b matmul).
    out = jax.lax.dot_general(
        h, w2t_ref[...],
        dimension_numbers=(((1,), (1,)), ((), ())),
        preferred_element_type=jnp.float32)                          # (tb, 8)
    out = out + b2_ref[...]

    # softmax over the 2 real logit lanes only (no 128-lane XLU reduction)
    l0 = out[:, 0:1]
    l1 = out[:, 1:2]
    v = out[:, VALUE_LANE:VALUE_LANE + 1]
    m = jnp.maximum(l0, l1)
    e0 = jnp.exp(l0 - m)
    e1 = jnp.exp(l1 - m)
    inv = 1.0 / (e0 + e1)   # exact; pl.reciprocal(approx=True) would need looser tolerance

    value_ref[...] = v                                               # (tb, 1)
    policy_ref[:, 0:1] = e0 * inv                                    # (tb, 2)
    policy_ref[:, 1:2] = e1 * inv


def _round_up(x, m):
    return (x + m - 1) // m * m


@functools.partial(jax.jit, static_argnames=("tile_b",))
def a2c_forward_batch(states, params, *, tile_b=DEFAULT_TILE_B):
    """states: (B, OBS_DIM) float32. Returns (value (B, 1), policy (B, NUM_ACTIONS))."""
    states = jnp.asarray(states, jnp.float32)
    b = states.shape[0]
    tb = min(tile_b, _round_up(b, 8))
    b_pad = _round_up(b, tb)
    grid = (b_pad // tb,)

    # padded states: obs in lanes 0..3, constant 1.0 in lane 4 (bias), zeros elsewhere
    x = jnp.zeros((b_pad, OBS_PAD), jnp.float32)
    x = x.at[:b, :OBS_DIM].set(states)
    x = x.at[:b, BIAS_LANE].set(1.0)

    value, policy = pl.pallas_call(
        _a2c_kernel,
        out_shape=(
            jax.ShapeDtypeStruct((b_pad, 1), jnp.float32),
            jax.ShapeDtypeStruct((b_pad, NUM_ACTIONS), jnp.float32),
        ),
        grid=grid,
        in_specs=[
            pl.BlockSpec((tb, OBS_PAD), lambda i: (i, 0)),
            pl.BlockSpec((OBS_PAD, COMB_HIDDEN), lambda i: (0, 0)),   # VMEM-resident
            pl.BlockSpec((OUT_PAD, COMB_HIDDEN), lambda i: (0, 0)),   # VMEM-resident
            pl.BlockSpec((1, OUT_PAD), lambda i: (0, 0)),             # VMEM-resident
        ],
        out_specs=(
            pl.BlockSpec((tb, 1), lambda i: (i, 0)),
            pl.BlockSpec((tb, NUM_ACTIONS), lambda i: (i, 0)),
        ),
        compiler_params=pltpu.CompilerParams(
            dimension_semantics=("parallel",)),    # v7x: split batch over both TCs
    )(x, params["w1"], params["w2t"], params["b2"])

    return value[:b], policy[:b]


def a2c_forward(state, params):
    """Matches the PyTorch module forward: state (OBS_DIM,) -> (value (1,1), policy (1,2))."""
    return a2c_forward_batch(jnp.asarray(state, jnp.float32)[None, :], params, tile_b=8)


def init_params(key):
    """Deterministic synthetic parameters with the same shapes as the module."""
    ks = jax.random.split(key, 8)

    def dense(kw, kb, fan_in, fan_out):
        # PyTorch Linear default init: U(-1/sqrt(fan_in), 1/sqrt(fan_in))
        bound = 1.0 / jnp.sqrt(jnp.float32(fan_in))
        w = jax.random.uniform(kw, (fan_in, fan_out), jnp.float32, -bound, bound)
        b = jax.random.uniform(kb, (fan_out,), jnp.float32, -bound, bound)
        return w, b

    aw1, ab1 = dense(ks[0], ks[1], OBS_DIM, HIDDEN_SIZE)
    aw2, ab2 = dense(ks[2], ks[3], HIDDEN_SIZE, NUM_ACTIONS)
    cw1, cb1 = dense(ks[4], ks[5], OBS_DIM, HIDDEN_SIZE)
    cw2, cb2 = dense(ks[6], ks[7], HIDDEN_SIZE, 1)

    # layer 1 fused along N; b1 folded into the bias row (state lane 4 == 1.0)
    w1 = jnp.zeros((OBS_PAD, COMB_HIDDEN), jnp.float32)
    w1 = w1.at[:OBS_DIM, :HIDDEN_SIZE].set(aw1)
    w1 = w1.at[:OBS_DIM, HIDDEN_SIZE:].set(cw1)
    w1 = w1.at[BIAS_LANE, :HIDDEN_SIZE].set(ab1)
    w1 = w1.at[BIAS_LANE, HIDDEN_SIZE:].set(cb1)

    # layer 2 fused block-diagonal, stored TRANSPOSED (OUT_PAD, COMB_HIDDEN): lane-dense
    w2t = jnp.zeros((OUT_PAD, COMB_HIDDEN), jnp.float32)
    w2t = w2t.at[:NUM_ACTIONS, :HIDDEN_SIZE].set(aw2.T)
    w2t = w2t.at[VALUE_LANE, HIDDEN_SIZE:].set(cw2[:, 0])
    b2 = jnp.zeros((1, OUT_PAD), jnp.float32)
    b2 = b2.at[0, :NUM_ACTIONS].set(ab2)
    b2 = b2.at[0, VALUE_LANE].set(cb2[0])

    raw = dict(aw1=aw1, ab1=ab1, aw2=aw2, ab2=ab2,
               cw1=cw1, cb1=cb1, cw2=cw2, cb2=cb2)
    fused = dict(w1=w1, w2t=w2t, b2=b2)
    return raw, fused


def reference_forward(states, raw):
    """Pure-JAX reference replicating the PyTorch forward (batched)."""
    x = jnp.asarray(states, jnp.float32)
    if x.ndim == 1:
        x = x[None, :]
    h_c = jnp.maximum(x @ raw["cw1"] + raw["cb1"], 0.0)
    value = h_c @ raw["cw2"] + raw["cb2"]                            # (B, 1)
    h_a = jnp.maximum(x @ raw["aw1"] + raw["ab1"], 0.0)
    logits = h_a @ raw["aw2"] + raw["ab2"]                           # (B, 2)
    policy = jax.nn.softmax(logits, axis=1)
    return value, policy


if __name__ == "__main__":
    key = jax.random.PRNGKey(0)
    k_params, k_state = jax.random.split(key)
    raw, fused = init_params(k_params)

    # Batched path: 256 CartPole-like observations -> grid of 2 batch tiles.
    B = 256
    states = jax.random.normal(k_state, (B, OBS_DIM), jnp.float32)
    value_b, policy_b = jax.block_until_ready(a2c_forward_batch(states, fused))
    v_ref, p_ref = reference_forward(states, raw)
    assert value_b.shape == (B, 1) and policy_b.shape == (B, NUM_ACTIONS)
    assert jnp.allclose(value_b, v_ref, atol=1e-5, rtol=1e-5)
    assert jnp.allclose(policy_b, p_ref, atol=1e-5, rtol=1e-5)
    assert jnp.allclose(jnp.sum(policy_b, axis=1), 1.0, atol=1e-5)

    # Single-state path matching the PyTorch module forward signature.
    value, policy = jax.block_until_ready(a2c_forward(states[0], fused))
    assert value.shape == (1, 1) and policy.shape == (1, NUM_ACTIONS)
    assert jnp.allclose(value, v_ref[0:1], atol=1e-5, rtol=1e-5)
    assert jnp.allclose(policy, p_ref[0:1], atol=1e-5, rtol=1e-5)

    print("KERNEL_OK")
</pallas_src>

<mosaic_0001>
module attributes {stable_mosaic.version = 11 : i64} {
  func.func @_a2c_kernel(%arg0: i32, %arg1: memref<128x8xf32, #tpu.memory_space<vmem>>, %arg2: memref<8x512xf32, #tpu.memory_space<vmem>>, %arg3: memref<8x512xf32, #tpu.memory_space<vmem>>, %arg4: memref<1x8xf32, #tpu.memory_space<vmem>>, %arg5: memref<128x1xf32, #tpu.memory_space<vmem>>, %arg6: memref<128x2xf32, #tpu.memory_space<vmem>>) attributes {dimension_semantics = [#tpu.dimension_semantics<parallel>], iteration_bounds = array<i64: 2>, scalar_prefetch = 0 : i64, scratch_operands = 0 : i64, tpu.core_type = #tpu.core_type<tc>, window_params = [{transform_indices = @transform_0, window_bounds = array<i64: 128, 8>}, {pipeline_mode = #tpu.pipeline_mode<synchronous>, transform_indices = @transform_1, window_bounds = array<i64: 8, 512>}, {pipeline_mode = #tpu.pipeline_mode<synchronous>, transform_indices = @transform_2, window_bounds = array<i64: 8, 512>}, {pipeline_mode = #tpu.pipeline_mode<synchronous>, transform_indices = @transform_3, window_bounds = array<i64: 1, 8>}, {transform_indices = @transform_4, window_bounds = array<i64: 128, 1>}, {transform_indices = @transform_5, window_bounds = array<i64: 128, 2>}]} {
    %c0 = arith.constant 0 : index
    %c0_0 = arith.constant 0 : index
    %0 = vector.load %arg1[%c0, %c0_0] : memref<128x8xf32, #tpu.memory_space<vmem>>, vector<128x8xf32>
    %c0_1 = arith.constant 0 : index
    %c0_2 = arith.constant 0 : index
    %1 = vector.load %arg2[%c0_1, %c0_2] : memref<8x512xf32, #tpu.memory_space<vmem>>, vector<8x512xf32>
    %cst = arith.constant dense<0.000000e+00> : vector<128x512xf32>
    %2 = tpu.matmul %0, %1, %cst {dimension_numbers = #tpu.dot_dimension_numbers<[1], [0], [0], [1], [0, 0, 1, 1], [], []>} : vector<128x8xf32>, vector<8x512xf32>, vector<128x512xf32> -> vector<128x512xf32>
    %cst_3 = arith.constant 0.000000e+00 : f32
    %3 = vector.broadcast %cst_3 : f32 to vector<128x512xf32>
    %4 = arith.maximumf %2, %3 : vector<128x512xf32>
    %c0_4 = arith.constant 0 : index
    %c0_5 = arith.constant 0 : index
    %5 = vector.load %arg3[%c0_4, %c0_5] : memref<8x512xf32, #tpu.memory_space<vmem>>, vector<8x512xf32>
    %cst_6 = arith.constant dense<0.000000e+00> : vector<128x8xf32>
    %6 = tpu.matmul %4, %5, %cst_6 {dimension_numbers = #tpu.dot_dimension_numbers<[1], [1], [0], [0], [0, 0, 1, 0], [], []>} : vector<128x512xf32>, vector<8x512xf32>, vector<128x8xf32> -> vector<128x8xf32>
    %c0_7 = arith.constant 0 : index
    %c0_8 = arith.constant 0 : index
    %7 = vector.load %arg4[%c0_7, %c0_8] : memref<1x8xf32, #tpu.memory_space<vmem>>, vector<1x8xf32>
    %8 = vector.broadcast %7 : vector<1x8xf32> to vector<128x8xf32>
    %9 = arith.addf %6, %8 : vector<128x8xf32>
    %10 = vector.extract_strided_slice %9 {offsets = [0, 0], sizes = [128, 1], strides = [1, 1]} : vector<128x8xf32> to vector<128x1xf32>
    %11 = vector.extract_strided_slice %9 {offsets = [0, 1], sizes = [128, 1], strides = [1, 1]} : vector<128x8xf32> to vector<128x1xf32>
    %12 = vector.extract_strided_slice %9 {offsets = [0, 2], sizes = [128, 1], strides = [1, 1]} : vector<128x8xf32> to vector<128x1xf32>
    %13 = arith.maximumf %10, %11 : vector<128x1xf32>
    %14 = arith.subf %10, %13 : vector<128x1xf32>
    %15 = math.exp %14 : vector<128x1xf32>
    %16 = arith.subf %11, %13 : vector<128x1xf32>
    %17 = math.exp %16 : vector<128x1xf32>
    %18 = arith.addf %15, %17 : vector<128x1xf32>
    %cst_9 = arith.constant 1.000000e+00 : f32
    %19 = vector.broadcast %cst_9 : f32 to vector<128x1xf32>
    %20 = arith.divf %19, %18 : vector<128x1xf32>
    %c0_10 = arith.constant 0 : index
    %c0_11 = arith.constant 0 : index
    %21 = vector.load %arg5[%c0_10, %c0_11] : memref<128x1xf32, #tpu.memory_space<vmem>>, vector<128x1xf32>
    tpu.vector_store %arg5[%c0_10, %c0_11], %12 {strides = array<i32>} : memref<128x1xf32, #tpu.memory_space<vmem>>, vector<128x1xf32>,
    %22 = arith.mulf %15, %20 : vector<128x1xf32>
    %c0_12 = arith.constant 0 : index
    %c0_13 = arith.constant 0 : index
    %23 = vector.load %arg6[%c0_12, %c0_13] : memref<128x2xf32, #tpu.memory_space<vmem>>, vector<128x1xf32>
    tpu.vector_store %arg6[%c0_12, %c0_13], %22 {strides = array<i32>} : memref<128x2xf32, #tpu.memory_space<vmem>>, vector<128x1xf32>,
    %24 = arith.mulf %17, %20 : vector<128x1xf32>
    %c0_14 = arith.constant 0 : index
    %c1 = arith.constant 1 : index
    %25 = vector.load %arg6[%c0_14, %c1] : memref<128x2xf32, #tpu.memory_space<vmem>>, vector<128x1xf32>
    tpu.vector_store %arg6[%c0_14, %c1], %24 {strides = array<i32>} : memref<128x2xf32, #tpu.memory_space<vmem>>, vector<128x1xf32>,
    return
  }
  func.func @transform_0(%arg0: i32) -> (i32, i32) {
    %c0_i32 = arith.constant 0 : i32
    %c0_i32_0 = arith.constant 0 : i32
    return %arg0, %c0_i32 : i32, i32
  }
  func.func @transform_1(%arg0: i32) -> (i32, i32) {
    %c0_i32 = arith.constant 0 : i32
    %c0_i32_0 = arith.constant 0 : i32
    %c0_i32_1 = arith.constant 0 : i32
    return %c0_i32, %c0_i32_0 : i32, i32
  }
  func.func @transform_2(%arg0: i32) -> (i32, i32) {
    %c0_i32 = arith.constant 0 : i32
    %c0_i32_0 = arith.constant 0 : i32
    %c0_i32_1 = arith.constant 0 : i32
    return %c0_i32, %c0_i32_0 : i32, i32
  }
  func.func @transform_3(%arg0: i32) -> (i32, i32) {
    %c0_i32 = arith.constant 0 : i32
    %c0_i32_0 = arith.constant 0 : i32
    %c0_i32_1 = arith.constant 0 : i32
    return %c0_i32, %c0_i32_0 : i32, i32
  }
  func.func @transform_4(%arg0: i32) -> (i32, i32) {
    %c0_i32 = arith.constant 0 : i32
    %c0_i32_0 = arith.constant 0 : i32
    return %arg0, %c0_i32 : i32, i32
  }
  func.func @transform_5(%arg0: i32) -> (i32, i32) {
    %c0_i32 = arith.constant 0 : i32
    %c0_i32_0 = arith.constant 0 : i32
    return %arg0, %c0_i32 : i32, i32
  }
}

</mosaic_0001>

<llo_original>
// kernel: a2c_forward_batch.1
$region0: #{a2c_forward_batch.1}
  #allocation0 [shape = 'u32[]', space=smem, size = 0x4, offset = 0x4, fixed_abs, tag = 'smem constant byte address 0x4 - core index']
  #allocation1 [shape = 'u32[144,128]{1,0:T(1,128)}', space=vmem, size = 0x12000, scoped, tag = 'internal scratch']
  %s0 = inlined_call_operand.vmem [shape: f32[256,8], index: 0, kind: input, shape index: {}]
  %s1 = inlined_call_operand.vmem [shape: f32[8,512], index: 1, kind: input, shape index: {}]
  %s2 = inlined_call_operand.vmem [shape: f32[8,512], index: 2, kind: input, shape index: {}]
  %s3 = inlined_call_operand.vmem [shape: f32[1,8], index: 3, kind: input, shape index: {}]
  %s4 = inlined_call_operand.vmem [shape: f32[256,1], index: 4, kind: output, shape index: {0}]
  %s5 = inlined_call_operand.vmem [shape: f32[256,2], index: 5, kind: output, shape index: {1}]
  %6 = xla_tuple %s4, %s5
  %s7 = sld [smem:[#allocation0]]
  $region57: #{a2c_forward_batch.1} parent=0
    _
  %s9 = ssub.s32 1, %s7
  %s10 = scalar_select 0, %s9, %s7
  loop: start=0, step=1, limit=4
  $region2: #{a2c_forward_batch.1} parent=0 // loop_pre_header
    _
  $region3: #{a2c_forward_batch.1} parent=0 // loop_header
    %s12 = sphi 0, %s16
    %p13 = scmp.ge.s32.totalorder %s12, 4
    %s22 = sphi 0, %s24
    %s25 = sphi 0, %s22
    %s26 = sphi 0, %s25
    %s42 = sphi 0, %s26
    %s46 = sphi 0, %s46
    %s48 = sphi 0, %s46
    %s49 = sphi 0, %s48
    %s63 = sphi 0, %s49
    %s67 = sphi 0, %s67
    %s69 = sphi 0, %s67
    %s70 = sphi 0, %s69
    %s84 = sphi 0, %s70
    %s88 = sphi 0, %s88
    %s90 = sphi 0, %s88
    %s91 = sphi 0, %s90
    %s105 = sphi 0, %s91
    %s111 = sphi 0, %s113
    %s114 = sphi 0, %s111
    %s115 = sphi 0, %s114
    %s131 = sphi 0, %s115
    %s137 = sphi 0, %s139
    %s140 = sphi 0, %s137
    %s141 = sphi 0, %s140
    %s157 = sphi 0, %s141
  $region4: #{a2c_forward_batch.1} parent=0 // loop_header_branch
    %15 = sbr.rel (%p13) target = $region8
  $region5: #{a2c_forward_batch.1} parent=0 // loop_body
    %s17 = ssub.s32 %s12, 1
    %s18 = ssub.s32 %s12, 2
    %s19 = sadd.s32 %s12, 1
    %s20 = ssub.s32 %s12, %s19
    %p21 = scmp.eq.s32.totalorder %s20, 0
    %s23 = sadd.s32 %s22, 1
    %s24 = scalar_select %p21, %s22, %s23
    %p27 = pneg %p21
    %p28 = scmp.eq.s32.totalorder %s12, 1
    %p29 = por %p27, %p28
    %p30 = scmp.ne.s32.totalorder %s22, %s25
    %p31 = scmp.eq.s32.totalorder %s12, 0
    %p32 = por %p30, %p31
    %p33 = scmp.ne.s32.totalorder %s22, %s25
    %p34 = scmp.eq.s32.totalorder %s17, 1
    %p35 = por %p33, %p34
    %p36 = scmp.ne.s32.totalorder %s25, %s26
    %p37 = scmp.eq.s32.totalorder %s17, 0
    %p38 = por %p36, %p37
    %p39 = scmp.ne.s32.totalorder %s25, %s26
    %p40 = scmp.eq.s32.totalorder %s18, 1
    %p41 = por %p39, %p40
    %p43 = scmp.ne.s32.totalorder %s26, %s42
    %p44 = scmp.eq.s32.totalorder %s18, 0
    %p45 = por %p43, %p44
    %s47 = sadd.s32 %s46, 1
    %p50 = scmp.eq.s32.totalorder %s12, 1
    %p51 = scmp.ne.s32.totalorder %s46, %s48
    %p52 = scmp.eq.s32.totalorder %s12, 0
    %p53 = por %p51, %p52
    %p54 = scmp.ne.s32.totalorder %s46, %s48
    %p55 = scmp.eq.s32.totalorder %s17, 1
    %p56 = por %p54, %p55
    %p57 = scmp.ne.s32.totalorder %s48, %s49
    %p58 = scmp.eq.s32.totalorder %s17, 0
    %p59 = por %p57, %p58
    %p60 = scmp.ne.s32.totalorder %s48, %s49
    %p61 = scmp.eq.s32.totalorder %s18, 1
    %p62 = por %p60, %p61
    %p64 = scmp.ne.s32.totalorder %s49, %s63
    %p65 = scmp.eq.s32.totalorder %s18, 0
    %p66 = por %p64, %p65
    %s68 = sadd.s32 %s67, 1
    %p71 = scmp.eq.s32.totalorder %s12, 1
    %p72 = scmp.ne.s32.totalorder %s67, %s69
    %p73 = scmp.eq.s32.totalorder %s12, 0
    %p74 = por %p72, %p73
    %p75 = scmp.ne.s32.totalorder %s67, %s69
    %p76 = scmp.eq.s32.totalorder %s17, 1
    %p77 = por %p75, %p76
    %p78 = scmp.ne.s32.totalorder %s69, %s70
    %p79 = scmp.eq.s32.totalorder %s17, 0
    %p80 = por %p78, %p79
    %p81 = scmp.ne.s32.totalorder %s69, %s70
    %p82 = scmp.eq.s32.totalorder %s18, 1
    %p83 = por %p81, %p82
    %p85 = scmp.ne.s32.totalorder %s70, %s84
    %p86 = scmp.eq.s32.totalorder %s18, 0
    %p87 = por %p85, %p86
    %s89 = sadd.s32 %s88, 1
    %p92 = scmp.eq.s32.totalorder %s12, 1
    %p93 = scmp.ne.s32.totalorder %s88, %s90
    %p94 = scmp.eq.s32.totalorder %s12, 0
    %p95 = por %p93, %p94
    %p96 = scmp.ne.s32.totalorder %s88, %s90
    %p97 = scmp.eq.s32.totalorder %s17, 1
    %p98 = por %p96, %p97
    %p99 = scmp.ne.s32.totalorder %s90, %s91
    %p100 = scmp.eq.s32.totalorder %s17, 0
    %p101 = por %p99, %p100
    %p102 = scmp.ne.s32.totalorder %s90, %s91
    %p103 = scmp.eq.s32.totalorder %s18, 1
    %p104 = por %p102, %p103
    %p106 = scmp.ne.s32.totalorder %s91, %s105
    %p107 = scmp.eq.s32.totalorder %s18, 0
    %p108 = por %p106, %p107
    %s109 = ssub.s32 %s12, %s19
    %p110 = scmp.eq.s32.totalorder %s109, 0
    %s112 = sadd.s32 %s111, 1
    %s113 = scalar_select %p110, %s111, %s112
    %p116 = pneg %p110
    %p117 = scmp.eq.s32.totalorder %s12, 1
    %p118 = por %p116, %p117
    %p119 = scmp.ne.s32.totalorder %s111, %s114
    %p120 = scmp.eq.s32.totalorder %s12, 0
    %p121 = por %p119, %p120
    %p122 = scmp.ne.s32.totalorder %s111, %s114
    %p123 = scmp.eq.s32.totalorder %s17, 1
    %p124 = por %p122, %p123
    %p125 = scmp.ne.s32.totalorder %s114, %s115
    %p126 = scmp.eq.s32.totalorder %s17, 0
    %p127 = por %p125, %p126
    %p128 = scmp.ne.s32.totalorder %s114, %s115
    %p129 = scmp.eq.s32.totalorder %s18, 1
    %p130 = por %p128, %p129
    %p132 = scmp.ne.s32.totalorder %s115, %s131
    %p133 = scmp.eq.s32.totalorder %s18, 0
    %p134 = por %p132, %p133
    %s135 = ssub.s32 %s12, %s19
    %p136 = scmp.eq.s32.totalorder %s135, 0
    %s138 = sadd.s32 %s137, 1
    %s139 = scalar_select %p136, %s137, %s138
    %p142 = pneg %p136
    %p143 = scmp.eq.s32.totalorder %s12, 1
    %p144 = por %p142, %p143
    %p145 = scmp.ne.s32.totalorder %s137, %s140
    %p146 = scmp.eq.s32.totalorder %s12, 0
    %p147 = por %p145, %p146
    %p148 = scmp.ne.s32.totalorder %s137, %s140
    %p149 = scmp.eq.s32.totalorder %s17, 1
    %p150 = por %p148, %p149
    %p151 = scmp.ne.s32.totalorder %s140, %s141
    %p152 = scmp.eq.s32.totalorder %s17, 0
    %p153 = por %p151, %p152
    %p154 = scmp.ne.s32.totalorder %s140, %s141
    %p155 = scmp.eq.s32.totalorder %s18, 1
    %p156 = por %p154, %p155
    %p158 = scmp.ne.s32.totalorder %s141, %s157
    %p159 = scmp.eq.s32.totalorder %s18, 0
    %p160 = por %p158, %p159
    %p161 = scmp.le.s32.totalorder 1, %s12
    %p162 = scmp.lt.s32.totalorder %s12, 3
    %p163 = pnand %p161, %p162
    %p164 = pneg %p163
    // Predicated region
    $region9: #{a2c_forward_batch.1} parent=5 // pred_check
      _
    $region10: #{a2c_forward_batch.1} parent=5 // pred_check_branch
      %166 = sbr.rel (%p163) target = $region12
    $region11: #{a2c_forward_batch.1} parent=5 // pred_region
      %s167 = ssub.s32 %s12, 1
      // Predicated region
      $region13: #{a2c_forward_batch.1} parent=11 // pred_check
        %p168 = pneg %p59
      $region14: #{a2c_forward_batch.1} parent=11 // pred_check_branch
        %170 = sbr.rel (%p168) target = $region16
      $region15: #{a2c_forward_batch.1} parent=11 // pred_region
        _
      $region16: #{a2c_forward_batch.1} parent=11 // pred_fallthru
        _
      // Predicated region
      $region17: #{a2c_forward_batch.1} parent=11 // pred_check
        %p171 = pneg %p80
      $region18: #{a2c_forward_batch.1} parent=11 // pred_check_branch
        %173 = sbr.rel (%p171) target = $region20
      $region19: #{a2c_forward_batch.1} parent=11 // pred_region
        _
      $region20: #{a2c_forward_batch.1} parent=11 // pred_fallthru
        _
      // Predicated region
      $region21: #{a2c_forward_batch.1} parent=11 // pred_check
        %p174 = pneg %p101
      $region22: #{a2c_forward_batch.1} parent=11 // pred_check_branch
        %176 = sbr.rel (%p174) target = $region24
      $region23: #{a2c_forward_batch.1} parent=11 // pred_region
        _
      $region24: #{a2c_forward_batch.1} parent=11 // pred_fallthru
        _
    $region12: #{a2c_forward_batch.1} parent=5 // pred_fallthru
      _
    %p177 = scmp.lt.s32.totalorder %s12, 2
    // Predicated region
    $region25: #{a2c_forward_batch.1} parent=5 // pred_check
      %p178 = pneg %p177
    $region26: #{a2c_forward_batch.1} parent=5 // pred_check_branch
      %180 = sbr.rel (%p178) target = $region28
    $region27: #{a2c_forward_batch.1} parent=5 // pred_region
      // Predicated region
      $region29: #{a2c_forward_batch.1} parent=27 // pred_check
        %p181 = pneg %p32
      $region30: #{a2c_forward_batch.1} parent=27 // pred_check_branch
        %183 = sbr.rel (%p181) target = $region32
      $region31: #{a2c_forward_batch.1} parent=27 // pred_region
        %s184 = smul.u32 16, %s12
        %p185 = scmp.lt.s32.totalorder %s184, 31
        %s186 = scalar_select %p185, %s184, 31
        %s187 = smul.addr %s186, 8
        %s188 = scalar_lea.vmem %s0, %s187
        %s189 = smul.u32 16, %s12
      $region32: #{a2c_forward_batch.1} parent=27 // pred_fallthru
        _
    $region28: #{a2c_forward_batch.1} parent=5 // pred_fallthru
      _
    %p190 = scmp.le.s32.totalorder 1, %s12
    %p191 = scmp.lt.s32.totalorder %s12, 3
    %p192 = pnand %p190, %p191
    %p193 = pneg %p192
    // Predicated region
    $region33: #{a2c_forward_batch.1} parent=5 // pred_check
      _
    $region34: #{a2c_forward_batch.1} parent=5 // pred_check_branch
      %195 = sbr.rel (%p192) target = $region36
    $region35: #{a2c_forward_batch.1} parent=5 // pred_region
      %s196 = ssub.s32 %s12, 1
      %s197 = smul.u32 16, %s17
      %p198 = scmp.lt.s32.totalorder %s197, 31
      %s199 = scalar_select %p198, %s197, 31
      %s200 = smul.addr %s199, 8
      %s201 = scalar_lea.vmem %s0, %s200
      %p202 = pneg %p38
      %p203 = pneg %p35
      %p204 = pneg %p59
      %p205 = pneg %p56
      %p206 = pneg %p80
      %p207 = pneg %p77
      %p208 = pneg %p101
      %p209 = pneg %p98
      %p210 = pneg %p127
      %p211 = pneg %p124
      %s212 = smul.u32 16, %s17
      %p213 = scmp.lt.s32.totalorder %s212, 31
      %s214 = scalar_select %p213, %s212, 31
      %s215 = smul.addr %s214, 8
      %s216 = scalar_lea.vmem %s4, %s215
      %p217 = pneg %p153
      %p218 = pneg %p150
      %s219 = smul.u32 16, %s17
      %p220 = scmp.lt.s32.totalorder %s219, 31
      %s221 = scalar_select %p220, %s219, 31
      %s222 = smul.addr %s221, 8
      %s223 = scalar_lea.vmem %s5, %s222
      %s224 = smul.u32 16, %s17
      %p225 = scmp.lt.s32.totalorder %s224, 31
      %s226 = scalar_select %p225, %s224, 31
      %s227 = smul.addr %s226, 8
      %s228 = scalar_lea.vmem %s0, %s227
      %s229 = smul.u32 16, %s17
      %s230 = smul.u32 16, %s17
      %p231 = scmp.lt.s32.totalorder %s230, 31
      %s232 = scalar_select %p231, %s230, 31
      %s233 = smul.addr %s232, 8
      %s234 = scalar_lea.vmem %s4, %s233
      %s235 = smul.u32 16, %s17
      %s236 = smul.u32 16, %s17
      %p237 = scmp.lt.s32.totalorder %s236, 31
      %s238 = scalar_select %p237, %s236, 31
      %s239 = smul.addr %s238, 8
      %s240 = scalar_lea.vmem %s5, %s239
      %s241 = smul.u32 16, %s17
      %v242 = vld [vmem:[%s228] sm:$0xff]
      %v243 = vld [vmem:[%s228 + $0x8] sm:$0xff]
      %v244 = vld [vmem:[%s228 + $0x10] sm:$0xff]
      %v245 = vld [vmem:[%s228 + $0x18] sm:$0xff]
      %v246 = vld [vmem:[%s228 + $0x20] sm:$0xff]
      %v247 = vld [vmem:[%s228 + $0x28] sm:$0xff]
      %v248 = vld [vmem:[%s228 + $0x30] sm:$0xff]
      %v249 = vld [vmem:[%s228 + $0x38] sm:$0xff]
      %v250 = vld [vmem:[%s228 + $0x40] sm:$0xff]
      %v251 = vld [vmem:[%s228 + $0x48] sm:$0xff]
      %v252 = vld [vmem:[%s228 + $0x50] sm:$0xff]
      %v253 = vld [vmem:[%s228 + $0x58] sm:$0xff]
      %v254 = vld [vmem:[%s228 + $0x60] sm:$0xff]
      %v255 = vld [vmem:[%s228 + $0x68] sm:$0xff]
      %v256 = vld [vmem:[%s228 + $0x70] sm:$0xff]
      %v257 = vld [vmem:[%s228 + $0x78] sm:$0xff]
      %v258 = vld [vmem:[%s1] sm:$0xff]
      %v259 = vld [vmem:[%s1 + $0x8] sm:$0xff]
      %v260 = vld [vmem:[%s1 + $0x10] sm:$0xff]
      %v261 = vld [vmem:[%s1 + $0x18] sm:$0xff]
      %vm262 = vcmask 64512
      %v264 = vsel %vm262, %v242, 0
      %v267 = vsel %vm262, %v243, 0
      %v270 = vsel %vm262, %v244, 0
      %v273 = vsel %vm262, %v245, 0
      %v276 = vsel %vm262, %v246, 0
      %v279 = vsel %vm262, %v247, 0
      %v282 = vsel %vm262, %v248, 0
      %v285 = vsel %vm262, %v249, 0
      %v288 = vsel %vm262, %v250, 0
      %v291 = vsel %vm262, %v251, 0
      %v294 = vsel %vm262, %v252, 0
      %v297 = vsel %vm262, %v253, 0
      %v300 = vsel %vm262, %v254, 0
      %v303 = vsel %vm262, %v255, 0
      %v306 = vsel %vm262, %v256, 0
      %v309 = vsel %vm262, %v257, 0
      %311 = vmatprep.subr.mxu0 %v259
      %312 = vmatpush1.msra.mxu0 %v258
      %313 = vmatprep.subr.mxu0 0.0
      %314 = vmatpush1.msra.mxu0 0.0
      %315 = vmatprep.subr.mxu0 0.0
      %316 = vmatpush1.msra.mxu0 0.0
      %317 = vmatprep.subr.mxu0 0.0
      %318 = vmatpush1.msra.mxu0 0.0
      %319 = vmatprep.subr.mxu0 0.0
      %320 = vmatpush1.msra.mxu0 0.0
      %321 = vmatprep.subr.mxu0 0.0
      %322 = vmatpush1.msra.mxu0 0.0
      %323 = vmatprep.subr.mxu0 0.0
      %324 = vmatpush1.msra.mxu0 0.0
      %325 = vmatprep.subr.mxu0 0.0
      %326 = vmatpush1.msra.mxu0 0.0
      %327 = vmatprep.subr.mxu0 0.0
      %328 = vmatpush1.msra.mxu0 0.0
      %329 = vmatprep.subr.mxu0 0.0
      %330 = vmatpush1.msra.mxu0 0.0
      %331 = vmatprep.subr.mxu0 0.0
      %332 = vmatpush1.msra.mxu0 0.0
      %333 = vmatprep.subr.mxu0 0.0
      %334 = vmatpush1.msra.mxu0 0.0
      %335 = vmatprep.subr.mxu0 0.0
      %336 = vmatpush1.msra.mxu0 0.0
      %337 = vmatprep.subr.mxu0 0.0
      %338 = vmatpush1.msra.mxu0 0.0
      %339 = vmatprep.subr.mxu0 0.0
      %340 = vmatpush1.msra.mxu0 0.0
      %341 = vmatprep.subr.mxu0 0.0
      %342 = vmatpush1.msra.mxu0 0.0
      %343 = vmatprep.subr.mxu0 0.0
      %344 = vmatpush1.msra.mxu0 0.0
      %345 = vmatprep.subr.mxu0 0.0
      %346 = vmatpush1.msra.mxu0 0.0
      %347 = vmatprep.subr.mxu0 0.0
      %348 = vmatpush1.msra.mxu0 0.0
      %349 = vmatprep.subr.mxu0 0.0
      %350 = vmatpush1.msra.mxu0 0.0
      %351 = vmatprep.subr.mxu0 0.0
      %352 = vmatpush1.msra.mxu0 0.0
      %353 = vmatprep.subr.mxu0 0.0
      %354 = vmatpush1.msra.mxu0 0.0
      %355 = vmatprep.subr.mxu0 0.0
      %356 = vmatpush1.msra.mxu0 0.0
      %357 = vmatprep.subr.mxu0 0.0
      %358 = vmatpush1.msra.mxu0 0.0
      %359 = vmatprep.subr.mxu0 0.0
      %360 = vmatpush1.msra.mxu0 0.0
      %361 = vmatprep.subr.mxu0 0.0
      %362 = vmatpush1.msra.mxu0 0.0
      %363 = vmatprep.subr.mxu0 0.0
      %364 = vmatpush1.msra.mxu0 0.0
      %365 = vmatprep.subr.mxu0 0.0
      %366 = vmatpush1.msra.mxu0 0.0
      %367 = vmatprep.subr.mxu0 0.0
      %368 = vmatpush1.msra.mxu0 0.0
      %369 = vmatprep.subr.mxu0 0.0
      %370 = vmatpush1.msra.mxu0 0.0
      %371 = vmatprep.subr.mxu0 0.0
      %372 = vmatpush1.msra.mxu0 0.0
      %373 = vmatprep.subr.mxu0 0.0
      %374 = vmatpush1.msra.mxu0 0.0
      %375 = vmatprep.mubr.f32.mxu0 0.0
      %376 = vmatmul.mubr.f32.gmra.mrb[0].mxu0 %v264
      %v377 = vpop.f32.mrb[0].mxu0
      %v378 = vadd.f32 0.0, %v377
      %v379 = vpop.f32.mrb[0].mxu0
      %v380 = vadd.f32 0.0, %v379
      %381 = vmatprep.mubr.f32.mxu0 0.0
      %382 = vmatmul.mubr.f32.gmra.mrb[0].mxu0 %v267
      %v383 = vpop.f32.mrb[0].mxu0
      %v384 = vadd.f32 0.0, %v383
      %v385 = vpop.f32.mrb[0].mxu0
      %v386 = vadd.f32 0.0, %v385
      %387 = vmatprep.mubr.f32.mxu0 0.0
      %388 = vmatmul.mubr.f32.gmra.mrb[0].mxu0 %v270
      %v389 = vpop.f32.mrb[0].mxu0
      %v390 = vadd.f32 0.0, %v389
      %v391 = vpop.f32.mrb[0].mxu0
      %v392 = vadd.f32 0.0, %v391
      %393 = vmatprep.mubr.f32.mxu0 0.0
      %394 = vmatmul.mubr.f32.gmra.mrb[0].mxu0 %v273
      %v395 = vpop.f32.mrb[0].mxu0
      %v396 = vadd.f32 0.0, %v395
      %v397 = vpop.f32.mrb[0].mxu0
      %v398 = vadd.f32 0.0, %v397
      %399 = vmatprep.mubr.f32.mxu0 0.0
      %400 = vmatmul.mubr.f32.gmra.mrb[0].mxu0 %v276
      %v401 = vpop.f32.mrb[0].mxu0
      %v402 = vadd.f32 0.0, %v401
      %v403 = vpop.f32.mrb[0].mxu0
      %v404 = vadd.f32 0.0, %v403
      %405 = vmatprep.mubr.f32.mxu0 0.0
      %406 = vmatmul.mubr.f32.gmra.mrb[0].mxu0 %v279
      %v407 = vpop.f32.mrb[0].mxu0
      %v408 = vadd.f32 0.0, %v407
      %v409 = vpop.f32.mrb[0].mxu0
      %v410 = vadd.f32 0.0, %v409
      %411 = vmatprep.mubr.f32.mxu0 0.0
      %412 = vmatmul.mubr.f32.gmra.mrb[0].mxu0 %v282
      %v413 = vpop.f32.mrb[0].mxu0
      %v414 = vadd.f32 0.0, %v413
      %v415 = vpop.f32.mrb[0].mxu0
      %v416 = vadd.f32 0.0, %v415
      %417 = vmatprep.mubr.f32.mxu0 0.0
      %418 = vmatmul.mubr.f32.gmra.mrb[0].mxu0 %v285
      %v419 = vpop.f32.mrb[0].mxu0
      %v420 = vadd.f32 0.0, %v419
      %v421 = vpop.f32.mrb[0].mxu0
      %v422 = vadd.f32 0.0, %v421
      %423 = vmatprep.mubr.f32.mxu0 0.0
      %424 = vmatmul.mubr.f32.gmra.mrb[0].mxu0 %v288
      %v425 = vpop.f32.mrb[0].mxu0
      %v426 = vadd.f32 0.0, %v425
      %v427 = vpop.f32.mrb[0].mxu0
      %v428 = vadd.f32 0.0, %v427
      %429 = vmatprep.mubr.f32.mxu0 0.0
      %430 = vmatmul.mubr.f32.gmra.mrb[0].mxu0 %v291
      %v431 = vpop.f32.mrb[0].mxu0
      %v432 = vadd.f32 0.0, %v431
      %v433 = vpop.f32.mrb[0].mxu0
      %v434 = vadd.f32 0.0, %v433
      %435 = vmatprep.mubr.f32.mxu0 0.0
      %436 = vmatmul.mubr.f32.gmra.mrb[0].mxu0 %v294
      %v437 = vpop.f32.mrb[0].mxu0
      %v438 = vadd.f32 0.0, %v437
      %v439 = vpop.f32.mrb[0].mxu0
      %v440 = vadd.f32 0.0, %v439
      %441 = vmatprep.mubr.f32.mxu0 0.0
      %442 = vmatmul.mubr.f32.gmra.mrb[0].mxu0 %v297
      %v443 = vpop.f32.mrb[0].mxu0
      %v444 = vadd.f32 0.0, %v443
      %v445 = vpop.f32.mrb[0].mxu0
      %v446 = vadd.f32 0.0, %v445
      %447 = vmatprep.mubr.f32.mxu0 0.0
      %448 = vmatmul.mubr.f32.gmra.mrb[0].mxu0 %v300
      %v449 = vpop.f32.mrb[0].mxu0
      %v450 = vadd.f32 0.0, %v449
      %v451 = vpop.f32.mrb[0].mxu0
      %v452 = vadd.f32 0.0, %v451
      %453 = vmatprep.mubr.f32.mxu0 0.0
      %454 = vmatmul.mubr.f32.gmra.mrb[0].mxu0 %v303
      %v455 = vpop.f32.mrb[0].mxu0
      %v456 = vadd.f32 0.0, %v455
      %v457 = vpop.f32.mrb[0].mxu0
      %v458 = vadd.f32 0.0, %v457
      %459 = vmatprep.mubr.f32.mxu0 0.0
      %460 = vmatmul.mubr.f32.gmra.mrb[0].mxu0 %v306
      %v461 = vpop.f32.mrb[0].mxu0
      %v462 = vadd.f32 0.0, %v461
      %v463 = vpop.f32.mrb[0].mxu0
      %v464 = vadd.f32 0.0, %v463
      %465 = vmatprep.mubr.f32.mxu0 0.0
      %466 = vmatmul.mubr.f32.gmra.mrb[0].mxu0 %v309
      %v467 = vpop.f32.mrb[0].mxu0
      %v468 = vadd.f32 0.0, %v467
      %v469 = vpop.f32.mrb[0].mxu0
      %v470 = vadd.f32 0.0, %v469
      %471 = vdwg.mxu0
      %472 = vmatprep.subr.mxu0 %v261
      %473 = vmatpush1.msra.mxu0 %v260
      %474 = vmatprep.subr.mxu0 0.0
      %475 = vmatpush1.msra.mxu0 0.0
      %476 = vmatprep.subr.mxu0 0.0
      %477 = vmatpush1.msra.mxu0 0.0
      %478 = vmatprep.subr.mxu0 0.0
      %479 = vmatpush1.msra.mxu0 0.0
      %480 = vmatprep.subr.mxu0 0.0
      %481 = vmatpush1.msra.mxu0 0.0
      %482 = vmatprep.subr.mxu0 0.0
      %483 = vmatpush1.msra.mxu0 0.0
      %484 = vmatprep.subr.mxu0 0.0
      %485 = vmatpush1.msra.mxu0 0.0
      %486 = vmatprep.subr.mxu0 0.0
      %487 = vmatpush1.msra.mxu0 0.0
      %488 = vmatprep.subr.mxu0 0.0
      %489 = vmatpush1.msra.mxu0 0.0
      %490 = vmatprep.subr.mxu0 0.0
      %491 = vmatpush1.msra.mxu0 0.0
      %492 = vmatprep.subr.mxu0 0.0
      %493 = vmatpush1.msra.mxu0 0.0
      %494 = vmatprep.subr.mxu0 0.0
      %495 = vmatpush1.msra.mxu0 0.0
      %496 = vmatprep.subr.mxu0 0.0
      %497 = vmatpush1.msra.mxu0 0.0
      %498 = vmatprep.subr.mxu0 0.0
      %499 = vmatpush1.msra.mxu0 0.0
      %500 = vmatprep.subr.mxu0 0.0
      %501 = vmatpush1.msra.mxu0 0.0
      %502 = vmatprep.subr.mxu0 0.0
      %503 = vmatpush1.msra.mxu0 0.0
      %504 = vmatprep.subr.mxu0 0.0
      %505 = vmatpush1.msra.mxu0 0.0
      %506 = vmatprep.subr.mxu0 0.0
      %507 = vmatpush1.msra.mxu0 0.0
      %508 = vmatprep.subr.mxu0 0.0
      %509 = vmatpush1.msra.mxu0 0.0
      %510 = vmatprep.subr.mxu0 0.0
      %511 = vmatpush1.msra.mxu0 0.0
      %512 = vmatprep.subr.mxu0 0.0
      %513 = vmatpush1.msra.mxu0 0.0
      %514 = vmatprep.subr.mxu0 0.0
      %515 = vmatpush1.msra.mxu0 0.0
      %516 = vmatprep.subr.mxu0 0.0
      %517 = vmatpush1.msra.mxu0 0.0
      %518 = vmatprep.subr.mxu0 0.0
      %519 = vmatpush1.msra.mxu0 0.0
      %520 = vmatprep.subr.mxu0 0.0
      %521 = vmatpush1.msra.mxu0 0.0
      %522 = vmatprep.subr.mxu0 0.0
      %523 = vmatpush1.msra.mxu0 0.0
      %524 = vmatprep.subr.mxu0 0.0
      %525 = vmatpush1.msra.mxu0 0.0
      %526 = vmatprep.subr.mxu0 0.0
      %527 = vmatpush1.msra.mxu0 0.0
      %528 = vmatprep.subr.mxu0 0.0
      %529 = vmatpush1.msra.mxu0 0.0
      %530 = vmatprep.subr.mxu0 0.0
      %531 = vmatpush1.msra.mxu0 0.0
      %532 = vmatprep.subr.mxu0 0.0
      %533 = vmatpush1.msra.mxu0 0.0
      %534 = vmatprep.subr.mxu0 0.0
      %535 = vmatpush1.msra.mxu0 0.0
      %536 = vmatprep.mubr.f32.mxu0 0.0
      %537 = vmatmul.mubr.f32.gmra.mrb[0].mxu0 %v264
      %v538 = vpop.f32.mrb[0].mxu0
      %v539 = vadd.f32 0.0, %v538
      %v540 = vpop.f32.mrb[0].mxu0
      %v541 = vadd.f32 0.0, %v540
      %542 = vmatprep.mubr.f32.mxu0 0.0
      %543 = vmatmul.mubr.f32.gmra.mrb[0].mxu0 %v267
      %v544 = vpop.f32.mrb[0].mxu0
      %v545 = vadd.f32 0.0, %v544
      %v546 = vpop.f32.mrb[0].mxu0
      %v547 = vadd.f32 0.0, %v546
      %548 = vmatprep.mubr.f32.mxu0 0.0
      %549 = vmatmul.mubr.f32.gmra.mrb[0].mxu0 %v270
      %v550 = vpop.f32.mrb[0].mxu0
      %v551 = vadd.f32 0.0, %v550
      %v552 = vpop.f32.mrb[0].mxu0
      %v553 = vadd.f32 0.0, %v552
      %554 = vmatprep.mubr.f32.mxu0 0.0
      %555 = vmatmul.mubr.f32.gmra.mrb[0].mxu0 %v273
      %v556 = vpop.f32.mrb[0].mxu0
      %v557 = vadd.f32 0.0, %v556
      %v558 = vpop.f32.mrb[0].mxu0
      %v559 = vadd.f32 0.0, %v558
      %560 = vmatprep.mubr.f32.mxu0 0.0
      %561 = vmatmul.mubr.f32.gmra.mrb[0].mxu0 %v276
      %v562 = vpop.f32.mrb[0].mxu0
      %v563 = vadd.f32 0.0, %v562
      %v564 = vpop.f32.mrb[0].mxu0
      %v565 = vadd.f32 0.0, %v564
      %566 = vmatprep.mubr.f32.mxu0 0.0
      %567 = vmatmul.mubr.f32.gmra.mrb[0].mxu0 %v279
      %v568 = vpop.f32.mrb[0].mxu0
      %v569 = vadd.f32 0.0, %v568
      %v570 = vpop.f32.mrb[0].mxu0
      %v571 = vadd.f32 0.0, %v570
      %572 = vmatprep.mubr.f32.mxu0 0.0
      %573 = vmatmul.mubr.f32.gmra.mrb[0].mxu0 %v282
      %v574 = vpop.f32.mrb[0].mxu0
      %v575 = vadd.f32 0.0, %v574
      %v576 = vpop.f32.mrb[0].mxu0
      %v577 = vadd.f32 0.0, %v576
      %578 = vmatprep.mubr.f32.mxu0 0.0
      %579 = vmatmul.mubr.f32.gmra.mrb[0].mxu0 %v285
      %v580 = vpop.f32.mrb[0].mxu0
      %v581 = vadd.f32 0.0, %v580
      %v582 = vpop.f32.mrb[0].mxu0
      %v583 = vadd.f32 0.0, %v582
      %584 = vmatprep.mubr.f32.mxu0 0.0
      %585 = vmatmul.mubr.f32.gmra.mrb[0].mxu0 %v288
      %v586 = vpop.f32.mrb[0].mxu0
      %v587 = vadd.f32 0.0, %v586
      %v588 = vpop.f32.mrb[0].mxu0
      %v589 = vadd.f32 0.0, %v588
      %590 = vmatprep.mubr.f32.mxu0 0.0
      %591 = vmatmul.mubr.f32.gmra.mrb[0].mxu0 %v291
      %v592 = vpop.f32.mrb[0].mxu0
      %v593 = vadd.f32 0.0, %v592
      %v594 = vpop.f32.mrb[0].mxu0
      %v595 = vadd.f32 0.0, %v594
      %596 = vmatprep.mubr.f32.mxu0 0.0
      %597 = vmatmul.mubr.f32.gmra.mrb[0].mxu0 %v294
      %v598 = vpop.f32.mrb[0].mxu0
      %v599 = vadd.f32 0.0, %v598
      %v600 = vpop.f32.mrb[0].mxu0
      %v601 = vadd.f32 0.0, %v600
      %602 = vmatprep.mubr.f32.mxu0 0.0
      %603 = vmatmul.mubr.f32.gmra.mrb[0].mxu0 %v297
      %v604 = vpop.f32.mrb[0].mxu0
      %v605 = vadd.f32 0.0, %v604
      %v606 = vpop.f32.mrb[0].mxu0
      %v607 = vadd.f32 0.0, %v606
      %608 = vmatprep.mubr.f32.mxu0 0.0
      %609 = vmatmul.mubr.f32.gmra.mrb[0].mxu0 %v300
      %v610 = vpop.f32.mrb[0].mxu0
      %v611 = vadd.f32 0.0, %v610
      %v612 = vpop.f32.mrb[0].mxu0
      %v613 = vadd.f32 0.0, %v612
      %614 = vmatprep.mubr.f32.mxu0 0.0
      %615 = vmatmul.mubr.f32.gmra.mrb[0].mxu0 %v303
      %v616 = vpop.f32.mrb[0].mxu0
      %v617 = vadd.f32 0.0, %v616
      %v618 = vpop.f32.mrb[0].mxu0
      %v619 = vadd.f32 0.0, %v618
      %620 = vmatprep.mubr.f32.mxu0 0.0
      %621 = vmatmul.mubr.f32.gmra.mrb[0].mxu0 %v306
      %v622 = vpop.f32.mrb[0].mxu0
      %v623 = vadd.f32 0.0, %v622
      %v624 = vpop.f32.mrb[0].mxu0
      %v625 = vadd.f32 0.0, %v624
      %626 = vmatprep.mubr.f32.mxu0 0.0
      %627 = vmatmul.mubr.f32.gmra.mrb[0].mxu0 %v309
      %v628 = vpop.f32.mrb[0].mxu0
      %v629 = vadd.f32 0.0, %v628
      %v630 = vpop.f32.mrb[0].mxu0
      %v631 = vadd.f32 0.0, %v630
      %632 = vdwg.mxu0
      %v633 = vmax.f32 %v378, 0.0
      %v634 = vmax.f32 %v380, 0.0
      %v635 = vmax.f32 %v539, 0.0
      %v636 = vmax.f32 %v541, 0.0
      %v637 = vmax.f32 %v384, 0.0
      %v638 = vmax.f32 %v386, 0.0
      %v639 = vmax.f32 %v545, 0.0
      %v640 = vmax.f32 %v547, 0.0
      %v641 = vmax.f32 %v390, 0.0
      %v642 = vmax.f32 %v392, 0.0
      %v643 = vmax.f32 %v551, 0.0
      %v644 = vmax.f32 %v553, 0.0
      %v645 = vmax.f32 %v396, 0.0
      %v646 = vmax.f32 %v398, 0.0
      %v647 = vmax.f32 %v557, 0.0
      %v648 = vmax.f32 %v559, 0.0
      %v649 = vmax.f32 %v402, 0.0
      %v650 = vmax.f32 %v404, 0.0
      %v651 = vmax.f32 %v563, 0.0
      %v652 = vmax.f32 %v565, 0.0
      %v653 = vmax.f32 %v408, 0.0
      %v654 = vmax.f32 %v410, 0.0
      %v655 = vmax.f32 %v569, 0.0
      %v656 = vmax.f32 %v571, 0.0
      %v657 = vmax.f32 %v414, 0.0
      %v658 = vmax.f32 %v416, 0.0
      %v659 = vmax.f32 %v575, 0.0
      %v660 = vmax.f32 %v577, 0.0
      %v661 = vmax.f32 %v420, 0.0
      %v662 = vmax.f32 %v422, 0.0
      %v663 = vmax.f32 %v581, 0.0
      %v664 = vmax.f32 %v583, 0.0
      %v665 = vmax.f32 %v426, 0.0
      %v666 = vmax.f32 %v428, 0.0
      %v667 = vmax.f32 %v587, 0.0
      %v668 = vmax.f32 %v589, 0.0
      %v669 = vmax.f32 %v432, 0.0
      %v670 = vmax.f32 %v434, 0.0
      %v671 = vmax.f32 %v593, 0.0
      %v672 = vmax.f32 %v595, 0.0
      %v673 = vmax.f32 %v438, 0.0
      %v674 = vmax.f32 %v440, 0.0
      %v675 = vmax.f32 %v599, 0.0
      %v676 = vmax.f32 %v601, 0.0
      %v677 = vmax.f32 %v444, 0.0
      %v678 = vmax.f32 %v446, 0.0
      %v679 = vmax.f32 %v605, 0.0
      %v680 = vmax.f32 %v607, 0.0
      %v681 = vmax.f32 %v450, 0.0
      %v682 = vmax.f32 %v452, 0.0
      %v683 = vmax.f32 %v611, 0.0
      %v684 = vmax.f32 %v613, 0.0
      %v685 = vmax.f32 %v456, 0.0
      %v686 = vmax.f32 %v458, 0.0
      %v687 = vmax.f32 %v617, 0.0
      %v688 = vmax.f32 %v619, 0.0
      %v689 = vmax.f32 %v462, 0.0
      %v690 = vmax.f32 %v464, 0.0
      %v691 = vmax.f32 %v623, 0.0
      %v692 = vmax.f32 %v625, 0.0
      %v693 = vmax.f32 %v468, 0.0
      %v694 = vmax.f32 %v470, 0.0
      %v695 = vmax.f32 %v629, 0.0
      %v696 = vmax.f32 %v631, 0.0
      %v697 = vld [vmem:[%s2] sm:$0xff]
      %v698 = vld [vmem:[%s2 + $0x8] sm:$0xff]
      %v699 = vld [vmem:[%s2 + $0x10] sm:$0xff]
      %v700 = vld [vmem:[%s2 + $0x18] sm:$0xff]
      %v701 = vld [vmem:[%s3] sm:$0x1]
      %v703 = vlaneseq
      %v704 = vshrl.u32 %v703, 7
      %v705 = vsub.s32 0, %v704
      %v706 = vrot.slane %v701, %v705
      %708 = vmatprep.subr.mxu0 %v698
      %709 = vmatpush1.xpose.msra.mxu0 %v697
      %710 = vmatprep.subr.mxu0 0.0
      %711 = vmatpush1.xpose.msra.mxu0 0.0
      %712 = vmatprep.subr.mxu0 0.0
      %713 = vmatpush1.xpose.msra.mxu0 0.0
      %714 = vmatprep.subr.mxu0 0.0
      %715 = vmatpush1.xpose.msra.mxu0 0.0
      %716 = vmatprep.subr.mxu0 0.0
      %717 = vmatpush1.xpose.msra.mxu0 0.0
      %718 = vmatprep.subr.mxu0 0.0
      %719 = vmatpush1.xpose.msra.mxu0 0.0
      %720 = vmatprep.subr.mxu0 0.0
      %721 = vmatpush1.xpose.msra.mxu0 0.0
      %722 = vmatprep.subr.mxu0 0.0
      %723 = vmatpush1.xpose.msra.mxu0 0.0
      %724 = vmatprep.subr.mxu0 0.0
      %725 = vmatpush1.xpose.msra.mxu0 0.0
      %726 = vmatprep.subr.mxu0 0.0
      %727 = vmatpush1.xpose.msra.mxu0 0.0
      %728 = vmatprep.subr.mxu0 0.0
      %729 = vmatpush1.xpose.msra.mxu0 0.0
      %730 = vmatprep.subr.mxu0 0.0
      %731 = vmatpush1.xpose.msra.mxu0 0.0
      %732 = vmatprep.subr.mxu0 0.0
      %733 = vmatpush1.xpose.msra.mxu0 0.0
      %734 = vmatprep.subr.mxu0 0.0
      %735 = vmatpush1.xpose.msra.mxu0 0.0
      %736 = vmatprep.subr.mxu0 0.0
      %737 = vmatpush1.xpose.msra.mxu0 0.0
      %738 = vmatprep.subr.mxu0 0.0
      %739 = vmatpush1.xpose.msra.mxu0 0.0
      %740 = vmatprep.subr.mxu0 0.0
      %741 = vmatpush1.xpose.msra.mxu0 0.0
      %742 = vmatprep.subr.mxu0 0.0
      %743 = vmatpush1.xpose.msra.mxu0 0.0
      %744 = vmatprep.subr.mxu0 0.0
      %745 = vmatpush1.xpose.msra.mxu0 0.0
      %746 = vmatprep.subr.mxu0 0.0
      %747 = vmatpush1.xpose.msra.mxu0 0.0
      %748 = vmatprep.subr.mxu0 0.0
      %749 = vmatpush1.xpose.msra.mxu0 0.0
      %750 = vmatprep.subr.mxu0 0.0
      %751 = vmatpush1.xpose.msra.mxu0 0.0
      %752 = vmatprep.subr.mxu0 0.0
      %753 = vmatpush1.xpose.msra.mxu0 0.0
      %754 = vmatprep.subr.mxu0 0.0
      %755 = vmatpush1.xpose.msra.mxu0 0.0
      %756 = vmatprep.subr.mxu0 0.0
      %757 = vmatpush1.xpose.msra.mxu0 0.0
      %758 = vmatprep.subr.mxu0 0.0
      %759 = vmatpush1.xpose.msra.mxu0 0.0
      %760 = vmatprep.subr.mxu0 0.0
      %761 = vmatpush1.xpose.msra.mxu0 0.0
      %762 = vmatprep.subr.mxu0 0.0
      %763 = vmatpush1.xpose.msra.mxu0 0.0
      %764 = vmatprep.subr.mxu0 0.0
      %765 = vmatpush1.xpose.msra.mxu0 0.0
      %766 = vmatprep.subr.mxu0 0.0
      %767 = vmatpush1.xpose.msra.mxu0 0.0
      %768 = vmatprep.subr.mxu0 0.0
      %769 = vmatpush1.xpose.msra.mxu0 0.0
      %770 = vmatprep.subr.mxu0 0.0
      %771 = vmatpush1.xpose.msra.mxu0 0.0
      %772 = vmatprep.mubr.f32.mxu0 %v634
      %773 = vmatmul.mubr.f32.gmra.mrb[0].mxu0 %v633
      %v774 = vpop.f32.mrb[0].mxu0
      %v775 = vadd.f32 %v706, %v774
      %v776 = vpop.f32.mrb[0].mxu0
      %777 = vmatprep.mubr.f32.mxu0 %v638
      %778 = vmatmul.mubr.f32.gmra.mrb[0].mxu0 %v637
      %v779 = vpop.f32.mrb[0].mxu0
      %v780 = vadd.f32 %v706, %v779
      %v781 = vpop.f32.mrb[0].mxu0
      %782 = vmatprep.mubr.f32.mxu0 %v642
      %783 = vmatmul.mubr.f32.gmra.mrb[0].mxu0 %v641
      %v784 = vpop.f32.mrb[0].mxu0
      %v785 = vadd.f32 %v706, %v784
      %v786 = vpop.f32.mrb[0].mxu0
      %787 = vmatprep.mubr.f32.mxu0 %v646
      %788 = vmatmul.mubr.f32.gmra.mrb[0].mxu0 %v645
      %v789 = vpop.f32.mrb[0].mxu0
      %v790 = vadd.f32 %v706, %v789
      %v791 = vpop.f32.mrb[0].mxu0
      %792 = vmatprep.mubr.f32.mxu0 %v650
      %793 = vmatmul.mubr.f32.gmra.mrb[0].mxu0 %v649
      %v794 = vpop.f32.mrb[0].mxu0
      %v795 = vadd.f32 %v706, %v794
      %v796 = vpop.f32.mrb[0].mxu0
      %797 = vmatprep.mubr.f32.mxu0 %v654
      %798 = vmatmul.mubr.f32.gmra.mrb[0].mxu0 %v653
      %v799 = vpop.f32.mrb[0].mxu0
      %v800 = vadd.f32 %v706, %v799
      %v801 = vpop.f32.mrb[0].mxu0
      %802 = vmatprep.mubr.f32.mxu0 %v658
      %803 = vmatmul.mubr.f32.gmra.mrb[0].mxu0 %v657
      %v804 = vpop.f32.mrb[0].mxu0
      %v805 = vadd.f32 %v706, %v804
      %v806 = vpop.f32.mrb[0].mxu0
      %807 = vmatprep.mubr.f32.mxu0 %v662
      %808 = vmatmul.mubr.f32.gmra.mrb[0].mxu0 %v661
      %v809 = vpop.f32.mrb[0].mxu0
      %v810 = vadd.f32 %v706, %v809
      %v811 = vpop.f32.mrb[0].mxu0
      %812 = vmatprep.mubr.f32.mxu0 %v666
      %813 = vmatmul.mubr.f32.gmra.mrb[0].mxu0 %v665
      %v814 = vpop.f32.mrb[0].mxu0
      %v815 = vadd.f32 %v706, %v814
      %v816 = vpop.f32.mrb[0].mxu0
      %817 = vmatprep.mubr.f32.mxu0 %v670
      %818 = vmatmul.mubr.f32.gmra.mrb[0].mxu0 %v669
      %v819 = vpop.f32.mrb[0].mxu0
      %v820 = vadd.f32 %v706, %v819
      %v821 = vpop.f32.mrb[0].mxu0
      %822 = vmatprep.mubr.f32.mxu0 %v674
      %823 = vmatmul.mubr.f32.gmra.mrb[0].mxu0 %v673
      %v824 = vpop.f32.mrb[0].mxu0
      %v825 = vadd.f32 %v706, %v824
      %v826 = vpop.f32.mrb[0].mxu0
      %827 = vmatprep.mubr.f32.mxu0 %v678
      %828 = vmatmul.mubr.f32.gmra.mrb[0].mxu0 %v677
      %v829 = vpop.f32.mrb[0].mxu0
      %v830 = vadd.f32 %v706, %v829
      %v831 = vpop.f32.mrb[0].mxu0
      %832 = vmatprep.mubr.f32.mxu0 %v682
      %833 = vmatmul.mubr.f32.gmra.mrb[0].mxu0 %v681
      %v834 = vpop.f32.mrb[0].mxu0
      %v835 = vadd.f32 %v706, %v834
      %v836 = vpop.f32.mrb[0].mxu0
      %837 = vmatprep.mubr.f32.mxu0 %v686
      %838 = vmatmul.mubr.f32.gmra.mrb[0].mxu0 %v685
      %v839 = vpop.f32.mrb[0].mxu0
      %v840 = vadd.f32 %v706, %v839
      %v841 = vpop.f32.mrb[0].mxu0
      %842 = vmatprep.mubr.f32.mxu0 %v690
      %843 = vmatmul.mubr.f32.gmra.mrb[0].mxu0 %v689
      %v844 = vpop.f32.mrb[0].mxu0
      %v845 = vadd.f32 %v706, %v844
      %v846 = vpop.f32.mrb[0].mxu0
      %847 = vmatprep.mubr.f32.mxu0 %v694
      %848 = vmatmul.mubr.f32.gmra.mrb[0].mxu0 %v693
      %v849 = vpop.f32.mrb[0].mxu0
      %v850 = vadd.f32 %v706, %v849
      %v851 = vpop.f32.mrb[0].mxu0
      %852 = vdwg.mxu0
      %853 = vmatprep.subr.mxu0 %v700
      %854 = vmatpush1.xpose.msra.mxu0 %v699
      %855 = vmatprep.subr.mxu0 0.0
      %856 = vmatpush1.xpose.msra.mxu0 0.0
      %857 = vmatprep.subr.mxu0 0.0
      %858 = vmatpush1.xpose.msra.mxu0 0.0
      %859 = vmatprep.subr.mxu0 0.0
      %860 = vmatpush1.xpose.msra.mxu0 0.0
      %861 = vmatprep.subr.mxu0 0.0
      %862 = vmatpush1.xpose.msra.mxu0 0.0
      %863 = vmatprep.subr.mxu0 0.0
      %864 = vmatpush1.xpose.msra.mxu0 0.0
      %865 = vmatprep.subr.mxu0 0.0
      %866 = vmatpush1.xpose.msra.mxu0 0.0
      %867 = vmatprep.subr.mxu0 0.0
      %868 = vmatpush1.xpose.msra.mxu0 0.0
      %869 = vmatprep.subr.mxu0 0.0
      %870 = vmatpush1.xpose.msra.mxu0 0.0
      %871 = vmatprep.subr.mxu0 0.0
      %872 = vmatpush1.xpose.msra.mxu0 0.0
      %873 = vmatprep.subr.mxu0 0.0
      %874 = vmatpush1.xpose.msra.mxu0 0.0
      %875 = vmatprep.subr.mxu0 0.0
      %876 = vmatpush1.xpose.msra.mxu0 0.0
      %877 = vmatprep.subr.mxu0 0.0
      %878 = vmatpush1.xpose.msra.mxu0 0.0
      %879 = vmatprep.subr.mxu0 0.0
      %880 = vmatpush1.xpose.msra.mxu0 0.0
      %881 = vmatprep.subr.mxu0 0.0
      %882 = vmatpush1.xpose.msra.mxu0 0.0
      %883 = vmatprep.subr.mxu0 0.0
      %884 = vmatpush1.xpose.msra.mxu0 0.0
      %885 = vmatprep.subr.mxu0 0.0
      %886 = vmatpush1.xpose.msra.mxu0 0.0
      %887 = vmatprep.subr.mxu0 0.0
      %888 = vmatpush1.xpose.msra.mxu0 0.0
      %889 = vmatprep.subr.mxu0 0.0
      %890 = vmatpush1.xpose.msra.mxu0 0.0
      %891 = vmatprep.subr.mxu0 0.0
      %892 = vmatpush1.xpose.msra.mxu0 0.0
      %893 = vmatprep.subr.mxu0 0.0
      %894 = vmatpush1.xpose.msra.mxu0 0.0
      %895 = vmatprep.subr.mxu0 0.0
      %896 = vmatpush1.xpose.msra.mxu0 0.0
      %897 = vmatprep.subr.mxu0 0.0
      %898 = vmatpush1.xpose.msra.mxu0 0.0
      %899 = vmatprep.subr.mxu0 0.0
      %900 = vmatpush1.xpose.msra.mxu0 0.0
      %901 = vmatprep.subr.mxu0 0.0
      %902 = vmatpush1.xpose.msra.mxu0 0.0
      %903 = vmatprep.subr.mxu0 0.0
      %904 = vmatpush1.xpose.msra.mxu0 0.0
      %905 = vmatprep.subr.mxu0 0.0
      %906 = vmatpush1.xpose.msra.mxu0 0.0
      %907 = vmatprep.subr.mxu0 0.0
      %908 = vmatpush1.xpose.msra.mxu0 0.0
      %909 = vmatprep.subr.mxu0 0.0
      %910 = vmatpush1.xpose.msra.mxu0 0.0
      %911 = vmatprep.subr.mxu0 0.0
      %912 = vmatpush1.xpose.msra.mxu0 0.0
      %913 = vmatprep.subr.mxu0 0.0
      %914 = vmatpush1.xpose.msra.mxu0 0.0
      %915 = vmatprep.subr.mxu0 0.0
      %916 = vmatpush1.xpose.msra.mxu0 0.0
      %917 = vmatprep.mubr.f32.mxu0 %v636
      %918 = vmatmul.mubr.f32.gmra.mrb[0].mxu0 %v635
      %v919 = vpop.f32.mrb[0].mxu0
      %v920 = vadd.f32 %v775, %v919
      %v921 = vpop.f32.mrb[0].mxu0
      %922 = vmatprep.mubr.f32.mxu0 %v640
      %923 = vmatmul.mubr.f32.gmra.mrb[0].mxu0 %v639
      %v924 = vpop.f32.mrb[0].mxu0
      %v925 = vadd.f32 %v780, %v924
      %v926 = vpop.f32.mrb[0].mxu0
      %927 = vmatprep.mubr.f32.mxu0 %v644
      %928 = vmatmul.mubr.f32.gmra.mrb[0].mxu0 %v643
      %v929 = vpop.f32.mrb[0].mxu0
      %v930 = vadd.f32 %v785, %v929
      %v931 = vpop.f32.mrb[0].mxu0
      %932 = vmatprep.mubr.f32.mxu0 %v648
      %933 = vmatmul.mubr.f32.gmra.mrb[0].mxu0 %v647
      %v934 = vpop.f32.mrb[0].mxu0
      %v935 = vadd.f32 %v790, %v934
      %v936 = vpop.f32.mrb[0].mxu0
      %937 = vmatprep.mubr.f32.mxu0 %v652
      %938 = vmatmul.mubr.f32.gmra.mrb[0].mxu0 %v651
      %v939 = vpop.f32.mrb[0].mxu0
      %v940 = vadd.f32 %v795, %v939
      %v941 = vpop.f32.mrb[0].mxu0
      %942 = vmatprep.mubr.f32.mxu0 %v656
      %943 = vmatmul.mubr.f32.gmra.mrb[0].mxu0 %v655
      %v944 = vpop.f32.mrb[0].mxu0
      %v945 = vadd.f32 %v800, %v944
      %v946 = vpop.f32.mrb[0].mxu0
      %947 = vmatprep.mubr.f32.mxu0 %v660
      %948 = vmatmul.mubr.f32.gmra.mrb[0].mxu0 %v659
      %v949 = vpop.f32.mrb[0].mxu0
      %v950 = vadd.f32 %v805, %v949
      %v951 = vpop.f32.mrb[0].mxu0
      %952 = vmatprep.mubr.f32.mxu0 %v664
      %953 = vmatmul.mubr.f32.gmra.mrb[0].mxu0 %v663
      %v954 = vpop.f32.mrb[0].mxu0
      %v955 = vadd.f32 %v810, %v954
      %v956 = vpop.f32.mrb[0].mxu0
      %957 = vmatprep.mubr.f32.mxu0 %v668
      %958 = vmatmul.mubr.f32.gmra.mrb[0].mxu0 %v667
      %v959 = vpop.f32.mrb[0].mxu0
      %v960 = vadd.f32 %v815, %v959
      %v961 = vpop.f32.mrb[0].mxu0
      %962 = vmatprep.mubr.f32.mxu0 %v672
      %963 = vmatmul.mubr.f32.gmra.mrb[0].mxu0 %v671
      %v964 = vpop.f32.mrb[0].mxu0
      %v965 = vadd.f32 %v820, %v964
      %v966 = vpop.f32.mrb[0].mxu0
      %967 = vmatprep.mubr.f32.mxu0 %v676
      %968 = vmatmul.mubr.f32.gmra.mrb[0].mxu0 %v675
      %v969 = vpop.f32.mrb[0].mxu0
      %v970 = vadd.f32 %v825, %v969
      %v971 = vpop.f32.mrb[0].mxu0
      %972 = vmatprep.mubr.f32.mxu0 %v680
      %973 = vmatmul.mubr.f32.gmra.mrb[0].mxu0 %v679
      %v974 = vpop.f32.mrb[0].mxu0
      %v975 = vadd.f32 %v830, %v974
      %v976 = vpop.f32.mrb[0].mxu0
      %977 = vmatprep.mubr.f32.mxu0 %v684
      %978 = vmatmul.mubr.f32.gmra.mrb[0].mxu0 %v683
      %v979 = vpop.f32.mrb[0].mxu0
      %v980 = vadd.f32 %v835, %v979
      %v981 = vpop.f32.mrb[0].mxu0
      %982 = vmatprep.mubr.f32.mxu0 %v688
      %983 = vmatmul.mubr.f32.gmra.mrb[0].mxu0 %v687
      %v984 = vpop.f32.mrb[0].mxu0
      %v985 = vadd.f32 %v840, %v984
      %v986 = vpop.f32.mrb[0].mxu0
      %987 = vmatprep.mubr.f32.mxu0 %v692
      %988 = vmatmul.mubr.f32.gmra.mrb[0].mxu0 %v691
      %v989 = vpop.f32.mrb[0].mxu0
      %v990 = vadd.f32 %v845, %v989
      %v991 = vpop.f32.mrb[0].mxu0
      %992 = vmatprep.mubr.f32.mxu0 %v696
      %993 = vmatmul.mubr.f32.gmra.mrb[0].mxu0 %v695
      %v994 = vpop.f32.mrb[0].mxu0
      %v995 = vadd.f32 %v850, %v994
      %v996 = vpop.f32.mrb[0].mxu0
      %997 = vdwg.mxu0
      %1014 = vrot.lane.b32.xlu0 %v920, 127
      %v1015 = vpop.permute.xlu0 %1014
      %1016 = vrot.lane.b32.xlu0 %v925, 127
      %v1017 = vpop.permute.xlu0 %1016
      %1018 = vrot.lane.b32.xlu0 %v930, 127
      %v1019 = vpop.permute.xlu0 %1018
      %1020 = vrot.lane.b32.xlu0 %v935, 127
      %v1021 = vpop.permute.xlu0 %1020
      %1022 = vrot.lane.b32.xlu0 %v940, 127
      %v1023 = vpop.permute.xlu0 %1022
      %1024 = vrot.lane.b32.xlu0 %v945, 127
      %v1025 = vpop.permute.xlu0 %1024
      %1026 = vrot.lane.b32.xlu0 %v950, 127
      %v1027 = vpop.permute.xlu0 %1026
      %1028 = vrot.lane.b32.xlu0 %v955, 127
      %v1029 = vpop.permute.xlu0 %1028
      %1030 = vrot.lane.b32.xlu0 %v960, 127
      %v1031 = vpop.permute.xlu0 %1030
      %1032 = vrot.lane.b32.xlu0 %v965, 127
      %v1033 = vpop.permute.xlu0 %1032
      %1034 = vrot.lane.b32.xlu0 %v970, 127
      %v1035 = vpop.permute.xlu0 %1034
      %1036 = vrot.lane.b32.xlu0 %v975, 127
      %v1037 = vpop.permute.xlu0 %1036
      %1038 = vrot.lane.b32.xlu0 %v980, 127
      %v1039 = vpop.permute.xlu0 %1038
      %1040 = vrot.lane.b32.xlu0 %v985, 127
      %v1041 = vpop.permute.xlu0 %1040
      %1042 = vrot.lane.b32.xlu0 %v990, 127
      %v1043 = vpop.permute.xlu0 %1042
      %1044 = vrot.lane.b32.xlu0 %v995, 127
      %v1045 = vpop.permute.xlu0 %1044
      %v1062 = vmax.f32 %v920, %v1015
      %v1063 = vmax.f32 %v925, %v1017
      %v1064 = vmax.f32 %v930, %v1019
      %v1065 = vmax.f32 %v935, %v1021
      %v1066 = vmax.f32 %v940, %v1023
      %v1067 = vmax.f32 %v945, %v1025
      %v1068 = vmax.f32 %v950, %v1027
      %v1069 = vmax.f32 %v955, %v1029
      %v1070 = vmax.f32 %v960, %v1031
      %v1071 = vmax.f32 %v965, %v1033
      %v1072 = vmax.f32 %v970, %v1035
      %v1073 = vmax.f32 %v975, %v1037
      %v1074 = vmax.f32 %v980, %v1039
      %v1075 = vmax.f32 %v985, %v1041
      %v1076 = vmax.f32 %v990, %v1043
      %v1077 = vmax.f32 %v995, %v1045
      %v1078 = vsub.f32 %v920, %v1062
      %v1079 = vsub.f32 %v925, %v1063
      %v1080 = vsub.f32 %v930, %v1064
      %v1081 = vsub.f32 %v935, %v1065
      %v1082 = vsub.f32 %v940, %v1066
      %v1083 = vsub.f32 %v945, %v1067
      %v1084 = vsub.f32 %v950, %v1068
      %v1085 = vsub.f32 %v955, %v1069
      %v1086 = vsub.f32 %v960, %v1070
      %v1087 = vsub.f32 %v965, %v1071
      %v1088 = vsub.f32 %v970, %v1072
      %v1089 = vsub.f32 %v975, %v1073
      %v1090 = vsub.f32 %v980, %v1074
      %v1091 = vsub.f32 %v985, %v1075
      %v1092 = vsub.f32 %v990, %v1076
      %v1093 = vsub.f32 %v995, %v1077
      %v1094 = vmul.f32 %v1078, 1.442695
      %v1095 = vpow.pop %v1094
      %v1096 = vmul.f32 %v1079, 1.442695
      %v1097 = vpow.pop %v1096
      %v1098 = vmul.f32 %v1080, 1.442695
      %v1099 = vpow.pop %v1098
      %v1100 = vmul.f32 %v1081, 1.442695
      %v1101 = vpow.pop %v1100
      %v1102 = vmul.f32 %v1082, 1.442695
      %v1103 = vpow.pop %v1102
      %v1104 = vmul.f32 %v1083, 1.442695
      %v1105 = vpow.pop %v1104
      %v1106 = vmul.f32 %v1084, 1.442695
      %v1107 = vpow.pop %v1106
      %v1108 = vmul.f32 %v1085, 1.442695
      %v1109 = vpow.pop %v1108
      %v1110 = vmul.f32 %v1086, 1.442695
      %v1111 = vpow.pop %v1110
      %v1112 = vmul.f32 %v1087, 1.442695
      %v1113 = vpow.pop %v1112
      %v1114 = vmul.f32 %v1088, 1.442695
      %v1115 = vpow.pop %v1114
      %v1116 = vmul.f32 %v1089, 1.442695
      %v1117 = vpow.pop %v1116
      %v1118 = vmul.f32 %v1090, 1.442695
      %v1119 = vpow.pop %v1118
      %v1120 = vmul.f32 %v1091, 1.442695
      %v1121 = vpow.pop %v1120
      %v1122 = vmul.f32 %v1092, 1.442695
      %v1123 = vpow.pop %v1122
      %v1124 = vmul.f32 %v1093, 1.442695
      %v1125 = vpow.pop %v1124
      %1142 = vrot.lane.b32.xlu0 %v1062, 1
      %v1143 = vpop.permute.xlu0 %1142
      %1144 = vrot.lane.b32.xlu0 %v1063, 1
      %v1145 = vpop.permute.xlu0 %1144
      %1146 = vrot.lane.b32.xlu0 %v1064, 1
      %v1147 = vpop.permute.xlu0 %1146
      %1148 = vrot.lane.b32.xlu0 %v1065, 1
      %v1149 = vpop.permute.xlu0 %1148
      %1150 = vrot.lane.b32.xlu0 %v1066, 1
      %v1151 = vpop.permute.xlu0 %1150
      %1152 = vrot.lane.b32.xlu0 %v1067, 1
      %v1153 = vpop.permute.xlu0 %1152
      %1154 = vrot.lane.b32.xlu0 %v1068, 1
      %v1155 = vpop.permute.xlu0 %1154
      %1156 = vrot.lane.b32.xlu0 %v1069, 1
      %v1157 = vpop.permute.xlu0 %1156
      %1158 = vrot.lane.b32.xlu0 %v1070, 1
      %v1159 = vpop.permute.xlu0 %1158
      %1160 = vrot.lane.b32.xlu0 %v1071, 1
      %v1161 = vpop.permute.xlu0 %1160
      %1162 = vrot.lane.b32.xlu0 %v1072, 1
      %v1163 = vpop.permute.xlu0 %1162
      %1164 = vrot.lane.b32.xlu0 %v1073, 1
      %v1165 = vpop.permute.xlu0 %1164
      %1166 = vrot.lane.b32.xlu0 %v1074, 1
      %v1167 = vpop.permute.xlu0 %1166
      %1168 = vrot.lane.b32.xlu0 %v1075, 1
      %v1169 = vpop.permute.xlu0 %1168
      %1170 = vrot.lane.b32.xlu0 %v1076, 1
      %v1171 = vpop.permute.xlu0 %1170
      %1172 = vrot.lane.b32.xlu0 %v1077, 1
      %v1173 = vpop.permute.xlu0 %1172
      %v1190 = vsub.f32 %v920, %v1143
      %v1191 = vsub.f32 %v925, %v1145
      %v1192 = vsub.f32 %v930, %v1147
      %v1193 = vsub.f32 %v935, %v1149
      %v1194 = vsub.f32 %v940, %v1151
      %v1195 = vsub.f32 %v945, %v1153
      %v1196 = vsub.f32 %v950, %v1155
      %v1197 = vsub.f32 %v955, %v1157
      %v1198 = vsub.f32 %v960, %v1159
      %v1199 = vsub.f32 %v965, %v1161
      %v1200 = vsub.f32 %v970, %v1163
      %v1201 = vsub.f32 %v975, %v1165
      %v1202 = vsub.f32 %v980, %v1167
      %v1203 = vsub.f32 %v985, %v1169
      %v1204 = vsub.f32 %v990, %v1171
      %v1205 = vsub.f32 %v995, %v1173
      %v1206 = vmul.f32 %v1190, 1.442695
      %v1207 = vpow.pop %v1206
      %v1208 = vmul.f32 %v1191, 1.442695
      %v1209 = vpow.pop %v1208
      %v1210 = vmul.f32 %v1192, 1.442695
      %v1211 = vpow.pop %v1210
      %v1212 = vmul.f32 %v1193, 1.442695
      %v1213 = vpow.pop %v1212
      %v1214 = vmul.f32 %v1194, 1.442695
      %v1215 = vpow.pop %v1214
      %v1216 = vmul.f32 %v1195, 1.442695
      %v1217 = vpow.pop %v1216
      %v1218 = vmul.f32 %v1196, 1.442695
      %v1219 = vpow.pop %v1218
      %v1220 = vmul.f32 %v1197, 1.442695
      %v1221 = vpow.pop %v1220
      %v1222 = vmul.f32 %v1198, 1.442695
      %v1223 = vpow.pop %v1222
      %v1224 = vmul.f32 %v1199, 1.442695
      %v1225 = vpow.pop %v1224
      %v1226 = vmul.f32 %v1200, 1.442695
      %v1227 = vpow.pop %v1226
      %v1228 = vmul.f32 %v1201, 1.442695
      %v1229 = vpow.pop %v1228
      %v1230 = vmul.f32 %v1202, 1.442695
      %v1231 = vpow.pop %v1230
      %v1232 = vmul.f32 %v1203, 1.442695
      %v1233 = vpow.pop %v1232
      %v1234 = vmul.f32 %v1204, 1.442695
      %v1235 = vpow.pop %v1234
      %v1236 = vmul.f32 %v1205, 1.442695
      %v1237 = vpow.pop %v1236
      %1254 = vrot.lane.b32.xlu0 %v1207, 127
      %v1255 = vpop.permute.xlu0 %1254
      %1256 = vrot.lane.b32.xlu0 %v1209, 127
      %v1257 = vpop.permute.xlu0 %1256
      %1258 = vrot.lane.b32.xlu0 %v1211, 127
      %v1259 = vpop.permute.xlu0 %1258
      %1260 = vrot.lane.b32.xlu0 %v1213, 127
      %v1261 = vpop.permute.xlu0 %1260
      %1262 = vrot.lane.b32.xlu0 %v1215, 127
      %v1263 = vpop.permute.xlu0 %1262
      %1264 = vrot.lane.b32.xlu0 %v1217, 127
      %v1265 = vpop.permute.xlu0 %1264
      %1266 = vrot.lane.b32.xlu0 %v1219, 127
      %v1267 = vpop.permute.xlu0 %1266
      %1268 = vrot.lane.b32.xlu0 %v1221, 127
      %v1269 = vpop.permute.xlu0 %1268
      %1270 = vrot.lane.b32.xlu0 %v1223, 127
      %v1271 = vpop.permute.xlu0 %1270
      %1272 = vrot.lane.b32.xlu0 %v1225, 127
      %v1273 = vpop.permute.xlu0 %1272
      %1274 = vrot.lane.b32.xlu0 %v1227, 127
      %v1275 = vpop.permute.xlu0 %1274
      %1276 = vrot.lane.b32.xlu0 %v1229, 127
      %v1277 = vpop.permute.xlu0 %1276
      %1278 = vrot.lane.b32.xlu0 %v1231, 127
      %v1279 = vpop.permute.xlu0 %1278
      %1280 = vrot.lane.b32.xlu0 %v1233, 127
      %v1281 = vpop.permute.xlu0 %1280
      %1282 = vrot.lane.b32.xlu0 %v1235, 127
      %v1283 = vpop.permute.xlu0 %1282
      %1284 = vrot.lane.b32.xlu0 %v1237, 127
      %v1285 = vpop.permute.xlu0 %1284
      %v1302 = vadd.f32 %v1095, %v1255
      %v1303 = vadd.f32 %v1097, %v1257
      %v1304 = vadd.f32 %v1099, %v1259
      %v1305 = vadd.f32 %v1101, %v1261
      %v1306 = vadd.f32 %v1103, %v1263
      %v1307 = vadd.f32 %v1105, %v1265
      %v1308 = vadd.f32 %v1107, %v1267
      %v1309 = vadd.f32 %v1109, %v1269
      %v1310 = vadd.f32 %v1111, %v1271
      %v1311 = vadd.f32 %v1113, %v1273
      %v1312 = vadd.f32 %v1115, %v1275
      %v1313 = vadd.f32 %v1117, %v1277
      %v1314 = vadd.f32 %v1119, %v1279
      %v1315 = vadd.f32 %v1121, %v1281
      %v1316 = vadd.f32 %v1123, %v1283
      %v1317 = vadd.f32 %v1125, %v1285
      %v1318 = vrcp.pop %v1302
      %v1319 = vmul.f32 1.0, %v1318
      %v1320 = vrcp.pop %v1303
      %v1321 = vmul.f32 1.0, %v1320
      %v1322 = vrcp.pop %v1304
      %v1323 = vmul.f32 1.0, %v1322
      %v1324 = vrcp.pop %v1305
      %v1325 = vmul.f32 1.0, %v1324
      %v1326 = vrcp.pop %v1306
      %v1327 = vmul.f32 1.0, %v1326
      %v1328 = vrcp.pop %v1307
      %v1329 = vmul.f32 1.0, %v1328
      %v1330 = vrcp.pop %v1308
      %v1331 = vmul.f32 1.0, %v1330
      %v1332 = vrcp.pop %v1309
      %v1333 = vmul.f32 1.0, %v1332
      %v1334 = vrcp.pop %v1310
      %v1335 = vmul.f32 1.0, %v1334
      %v1336 = vrcp.pop %v1311
      %v1337 = vmul.f32 1.0, %v1336
      %v1338 = vrcp.pop %v1312
      %v1339 = vmul.f32 1.0, %v1338
      %v1340 = vrcp.pop %v1313
      %v1341 = vmul.f32 1.0, %v1340
      %v1342 = vrcp.pop %v1314
      %v1343 = vmul.f32 1.0, %v1342
      %v1344 = vrcp.pop %v1315
      %v1345 = vmul.f32 1.0, %v1344
      %v1346 = vrcp.pop %v1316
      %v1347 = vmul.f32 1.0, %v1346
      %v1348 = vrcp.pop %v1317
      %v1349 = vmul.f32 1.0, %v1348
      %1350 = vrot.lane.b32.xlu0 %v920, 126
      %v1351 = vpop.permute.xlu0 %1350
      %1352 = vrot.lane.b32.xlu0 %v925, 126
      %v1353 = vpop.permute.xlu0 %1352
      %1354 = vrot.lane.b32.xlu0 %v930, 126
      %v1355 = vpop.permute.xlu0 %1354
      %1356 = vrot.lane.b32.xlu0 %v935, 126
      %v1357 = vpop.permute.xlu0 %1356
      %1358 = vrot.lane.b32.xlu0 %v940, 126
      %v1359 = vpop.permute.xlu0 %1358
      %1360 = vrot.lane.b32.xlu0 %v945, 126
      %v1361 = vpop.permute.xlu0 %1360
      %1362 = vrot.lane.b32.xlu0 %v950, 126
      %v1363 = vpop.permute.xlu0 %1362
      %1364 = vrot.lane.b32.xlu0 %v955, 126
      %v1365 = vpop.permute.xlu0 %1364
      %1366 = vrot.lane.b32.xlu0 %v960, 126
      %v1367 = vpop.permute.xlu0 %1366
      %1368 = vrot.lane.b32.xlu0 %v965, 126
      %v1369 = vpop.permute.xlu0 %1368
      %1370 = vrot.lane.b32.xlu0 %v970, 126
      %v1371 = vpop.permute.xlu0 %1370
      %1372 = vrot.lane.b32.xlu0 %v975, 126
      %v1373 = vpop.permute.xlu0 %1372
      %1374 = vrot.lane.b32.xlu0 %v980, 126
      %v1375 = vpop.permute.xlu0 %1374
      %1376 = vrot.lane.b32.xlu0 %v985, 126
      %v1377 = vpop.permute.xlu0 %1376
      %1378 = vrot.lane.b32.xlu0 %v990, 126
      %v1379 = vpop.permute.xlu0 %1378
      %1380 = vrot.lane.b32.xlu0 %v995, 126
      %v1381 = vpop.permute.xlu0 %1380
      %vm1398 = vcmask 7168
      %1399 = vst.msk [vmem:[%s234] sm:$0xff] %vm1398, %v1351
      %1400 = vst.msk [vmem:[%s234 + $0x8] sm:$0xff] %vm1398, %v1353
      %1401 = vst.msk [vmem:[%s234 + $0x10] sm:$0xff] %vm1398, %v1355
      %1402 = vst.msk [vmem:[%s234 + $0x18] sm:$0xff] %vm1398, %v1357
      %1403 = vst.msk [vmem:[%s234 + $0x20] sm:$0xff] %vm1398, %v1359
      %1404 = vst.msk [vmem:[%s234 + $0x28] sm:$0xff] %vm1398, %v1361
      %1405 = vst.msk [vmem:[%s234 + $0x30] sm:$0xff] %vm1398, %v1363
      %1406 = vst.msk [vmem:[%s234 + $0x38] sm:$0xff] %vm1398, %v1365
      %1407 = vst.msk [vmem:[%s234 + $0x40] sm:$0xff] %vm1398, %v1367
      %1408 = vst.msk [vmem:[%s234 + $0x48] sm:$0xff] %vm1398, %v1369
      %1409 = vst.msk [vmem:[%s234 + $0x50] sm:$0xff] %vm1398, %v1371
      %1410 = vst.msk [vmem:[%s234 + $0x58] sm:$0xff] %vm1398, %v1373
      %1411 = vst.msk [vmem:[%s234 + $0x60] sm:$0xff] %vm1398, %v1375
      %1412 = vst.msk [vmem:[%s234 + $0x68] sm:$0xff] %vm1398, %v1377
      %1413 = vst.msk [vmem:[%s234 + $0x70] sm:$0xff] %vm1398, %v1379
      %1414 = vst.msk [vmem:[%s234 + $0x78] sm:$0xff] %vm1398, %v1381
      %v1415 = vmul.f32 %v1095, %v1319
      %v1416 = vmul.f32 %v1097, %v1321
      %v1417 = vmul.f32 %v1099, %v1323
      %v1418 = vmul.f32 %v1101, %v1325
      %v1419 = vmul.f32 %v1103, %v1327
      %v1420 = vmul.f32 %v1105, %v1329
      %v1421 = vmul.f32 %v1107, %v1331
      %v1422 = vmul.f32 %v1109, %v1333
      %v1423 = vmul.f32 %v1111, %v1335
      %v1424 = vmul.f32 %v1113, %v1337
      %v1425 = vmul.f32 %v1115, %v1339
      %v1426 = vmul.f32 %v1117, %v1341
      %v1427 = vmul.f32 %v1119, %v1343
      %v1428 = vmul.f32 %v1121, %v1345
      %v1429 = vmul.f32 %v1123, %v1347
      %v1430 = vmul.f32 %v1125, %v1349
      %1431 = vst.msk [vmem:[%s240] sm:$0xff] %vm1398, %v1415
      %1432 = vst.msk [vmem:[%s240 + $0x8] sm:$0xff] %vm1398, %v1416
      %1433 = vst.msk [vmem:[%s240 + $0x10] sm:$0xff] %vm1398, %v1417
      %1434 = vst.msk [vmem:[%s240 + $0x18] sm:$0xff] %vm1398, %v1418
      %1435 = vst.msk [vmem:[%s240 + $0x20] sm:$0xff] %vm1398, %v1419
      %1436 = vst.msk [vmem:[%s240 + $0x28] sm:$0xff] %vm1398, %v1420
      %1437 = vst.msk [vmem:[%s240 + $0x30] sm:$0xff] %vm1398, %v1421
      %1438 = vst.msk [vmem:[%s240 + $0x38] sm:$0xff] %vm1398, %v1422
      %1439 = vst.msk [vmem:[%s240 + $0x40] sm:$0xff] %vm1398, %v1423
      %1440 = vst.msk [vmem:[%s240 + $0x48] sm:$0xff] %vm1398, %v1424
      %1441 = vst.msk [vmem:[%s240 + $0x50] sm:$0xff] %vm1398, %v1425
      %1442 = vst.msk [vmem:[%s240 + $0x58] sm:$0xff] %vm1398, %v1426
      %1443 = vst.msk [vmem:[%s240 + $0x60] sm:$0xff] %vm1398, %v1427
      %1444 = vst.msk [vmem:[%s240 + $0x68] sm:$0xff] %vm1398, %v1428
      %1445 = vst.msk [vmem:[%s240 + $0x70] sm:$0xff] %vm1398, %v1429
      %1446 = vst.msk [vmem:[%s240 + $0x78] sm:$0xff] %vm1398, %v1430
      %1463 = vrot.lane.b32.xlu0 %v1319, 1
      %v1464 = vpop.permute.xlu0 %1463
      %1465 = vrot.lane.b32.xlu0 %v1321, 1
      %v1466 = vpop.permute.xlu0 %1465
      %1467 = vrot.lane.b32.xlu0 %v1323, 1
      %v1468 = vpop.permute.xlu0 %1467
      %1469 = vrot.lane.b32.xlu0 %v1325, 1
      %v1470 = vpop.permute.xlu0 %1469
      %1471 = vrot.lane.b32.xlu0 %v1327, 1
      %v1472 = vpop.permute.xlu0 %1471
      %1473 = vrot.lane.b32.xlu0 %v1329, 1
      %v1474 = vpop.permute.xlu0 %1473
      %1475 = vrot.lane.b32.xlu0 %v1331, 1
      %v1476 = vpop.permute.xlu0 %1475
      %1477 = vrot.lane.b32.xlu0 %v1333, 1
      %v1478 = vpop.permute.xlu0 %1477
      %1479 = vrot.lane.b32.xlu0 %v1335, 1
      %v1480 = vpop.permute.xlu0 %1479
      %1481 = vrot.lane.b32.xlu0 %v1337, 1
      %v1482 = vpop.permute.xlu0 %1481
      %1483 = vrot.lane.b32.xlu0 %v1339, 1
      %v1484 = vpop.permute.xlu0 %1483
      %1485 = vrot.lane.b32.xlu0 %v1341, 1
      %v1486 = vpop.permute.xlu0 %1485
      %1487 = vrot.lane.b32.xlu0 %v1343, 1
      %v1488 = vpop.permute.xlu0 %1487
      %1489 = vrot.lane.b32.xlu0 %v1345, 1
      %v1490 = vpop.permute.xlu0 %1489
      %1491 = vrot.lane.b32.xlu0 %v1347, 1
      %v1492 = vpop.permute.xlu0 %1491
      %1493 = vrot.lane.b32.xlu0 %v1349, 1
      %v1494 = vpop.permute.xlu0 %1493
      %v1511 = vmul.f32 %v1207, %v1464
      %v1512 = vmul.f32 %v1209, %v1466
      %v1513 = vmul.f32 %v1211, %v1468
      %v1514 = vmul.f32 %v1213, %v1470
      %v1515 = vmul.f32 %v1215, %v1472
      %v1516 = vmul.f32 %v1217, %v1474
      %v1517 = vmul.f32 %v1219, %v1476
      %v1518 = vmul.f32 %v1221, %v1478
      %v1519 = vmul.f32 %v1223, %v1480
      %v1520 = vmul.f32 %v1225, %v1482
      %v1521 = vmul.f32 %v1227, %v1484
      %v1522 = vmul.f32 %v1229, %v1486
      %v1523 = vmul.f32 %v1231, %v1488
      %v1524 = vmul.f32 %v1233, %v1490
      %v1525 = vmul.f32 %v1235, %v1492
      %v1526 = vmul.f32 %v1237, %v1494
      %vm1527 = vcmask 15368
      %1528 = vst.msk [vmem:[%s240] sm:$0xff] %vm1527, %v1511
      %1529 = vst.msk [vmem:[%s240 + $0x8] sm:$0xff] %vm1527, %v1512
      %1530 = vst.msk [vmem:[%s240 + $0x10] sm:$0xff] %vm1527, %v1513
      %1531 = vst.msk [vmem:[%s240 + $0x18] sm:$0xff] %vm1527, %v1514
      %1532 = vst.msk [vmem:[%s240 + $0x20] sm:$0xff] %vm1527, %v1515
      %1533 = vst.msk [vmem:[%s240 + $0x28] sm:$0xff] %vm1527, %v1516
      %1534 = vst.msk [vmem:[%s240 + $0x30] sm:$0xff] %vm1527, %v1517
      %1535 = vst.msk [vmem:[%s240 + $0x38] sm:$0xff] %vm1527, %v1518
      %1536 = vst.msk [vmem:[%s240 + $0x40] sm:$0xff] %vm1527, %v1519
      %1537 = vst.msk [vmem:[%s240 + $0x48] sm:$0xff] %vm1527, %v1520
      %1538 = vst.msk [vmem:[%s240 + $0x50] sm:$0xff] %vm1527, %v1521
      %1539 = vst.msk [vmem:[%s240 + $0x58] sm:$0xff] %vm1527, %v1522
      %1540 = vst.msk [vmem:[%s240 + $0x60] sm:$0xff] %vm1527, %v1523
      %1541 = vst.msk [vmem:[%s240 + $0x68] sm:$0xff] %vm1527, %v1524
      %1542 = vst.msk [vmem:[%s240 + $0x70] sm:$0xff] %vm1527, %v1525
      %1543 = vst.msk [vmem:[%s240 + $0x78] sm:$0xff] %vm1527, %v1526
      %s1544 = smul.u32 16, %s17
      %p1545 = scmp.lt.s32.totalorder %s1544, 31
      %s1546 = scalar_select %p1545, %s1544, 31
      %s1547 = smul.addr %s1546, 8
      %s1548 = scalar_lea.vmem %s4, %s1547
      %s1549 = smul.u32 16, %s17
      %p1550 = scmp.lt.s32.totalorder %s1549, 31
      %s1551 = scalar_select %p1550, %s1549, 31
      %s1552 = smul.addr %s1551, 8
      %s1553 = scalar_lea.vmem %s5, %s1552
      // Predicated region
      $region37: #{a2c_forward_batch.1} parent=35 // pred_check
        %p1554 = pneg %p124
      $region38: #{a2c_forward_batch.1} parent=35 // pred_check_branch
        %1556 = sbr.rel (%p1554) target = $region40
      $region39: #{a2c_forward_batch.1} parent=35 // pred_region
        %s1557 = smul.u32 16, %s17
      $region40: #{a2c_forward_batch.1} parent=35 // pred_fallthru
        _
      // Predicated region
      $region41: #{a2c_forward_batch.1} parent=35 // pred_check
        %p1558 = pneg %p150
      $region42: #{a2c_forward_batch.1} parent=35 // pred_check_branch
        %1560 = sbr.rel (%p1558) target = $region44
      $region43: #{a2c_forward_batch.1} parent=35 // pred_region
        %s1561 = smul.u32 16, %s17
      $region44: #{a2c_forward_batch.1} parent=35 // pred_fallthru
        _
    $region36: #{a2c_forward_batch.1} parent=5 // pred_fallthru
      _
    %p1562 = scmp.le.s32.totalorder 2, %s12
    // Predicated region
    $region45: #{a2c_forward_batch.1} parent=5 // pred_check
      %p1563 = pneg %p1562
    $region46: #{a2c_forward_batch.1} parent=5 // pred_check_branch
      %1565 = sbr.rel (%p1563) target = $region48
    $region47: #{a2c_forward_batch.1} parent=5 // pred_region
      %s1566 = ssub.s32 %s12, 2
      // Predicated region
      $region49: #{a2c_forward_batch.1} parent=47 // pred_check
        %p1567 = pneg %p130
      $region50: #{a2c_forward_batch.1} parent=47 // pred_check_branch
        %1569 = sbr.rel (%p1567) target = $region52
      $region51: #{a2c_forward_batch.1} parent=47 // pred_region
        %s1570 = smul.u32 16, %s18
        %p1571 = scmp.lt.s32.totalorder %s1570, 31
        %s1572 = scalar_select %p1571, %s1570, 31
        %s1573 = smul.addr %s1572, 8
        %s1574 = scalar_lea.vmem %s4, %s1573
      $region52: #{a2c_forward_batch.1} parent=47 // pred_fallthru
        _
      // Predicated region
      $region53: #{a2c_forward_batch.1} parent=47 // pred_check
        %p1575 = pneg %p156
      $region54: #{a2c_forward_batch.1} parent=47 // pred_check_branch
        %1577 = sbr.rel (%p1575) target = $region56
      $region55: #{a2c_forward_batch.1} parent=47 // pred_region
        %s1578 = smul.u32 16, %s18
        %p1579 = scmp.lt.s32.totalorder %s1578, 31
        %s1580 = scalar_select %p1579, %s1578, 31
        %s1581 = smul.addr %s1580, 8
        %s1582 = scalar_lea.vmem %s5, %s1581
      $region56: #{a2c_forward_batch.1} parent=47 // pred_fallthru
        _
    $region48: #{a2c_forward_batch.1} parent=5 // pred_fallthru
      _
  $region6: #{a2c_forward_batch.1} parent=0 // loop_footer
    %s16 = sadd.s32 1, %s12
  $region7: #{a2c_forward_batch.1} parent=0 // loop_footer_branch
    %11 = sbr.rel target = $region3
  $region8: #{a2c_forward_batch.1} parent=0 // loop_exit
    _

</llo_original>
